<compile_context>
chip_gen: v7x
topology: tpu7x:2x2x1
jax: 0.10.0
libtpu: 0.0.40
codegen_flags: <defaults>
</compile_context>

<pallas_src>
import jax
import jax.numpy as jnp
from jax.experimental import pallas as pl
from jax.experimental.pallas import tpu as pltpu

EPS = 1e-5


def _round_up(v, m):
    return (v + m - 1) // m * m


def _conv_slab_weights(w, width):
    """3x3 OIHW conv weights -> 3 block-tridiagonal slab matrices (one per dy).

    Returned shape (3, width*Cin, width*Cout) bf16 with
      mat[dy, x_in*Cin + ci, x_out*Cout + co] = w[co, ci, dy, x_in - x_out + 1]
    (zero when |x_in - x_out| > 1), so dotting a (N*H, width*Cin) row slab with
    mat[dy] performs the x-direction convolution + channel mixing for kernel
    row dy, including the W-boundary zero padding.
    """
    cout, cin = w.shape[0], w.shape[1]
    mats = []
    for dy in range(3):
        m = jnp.zeros((width * cin, width * cout), jnp.float32)
        for dx in range(3):
            sel = jnp.eye(width, k=1 - dx, dtype=jnp.float32)  # sel[x_in, x_out]
            m = m + jnp.kron(sel, jnp.transpose(w[:, :, dy, dx]))
        mats.append(m)
    return jnp.stack(mats).astype(jnp.bfloat16)


def double_conv_bn_relu(x_nchw, w1, b1, g1, be1, w2, b2, g2, be2):
    """x_nchw: (N, Cin, H, W) float32; conv weights in PyTorch OIHW layout."""
    N, Cin, H, W = x_nchw.shape
    Cout = w1.shape[0]
    R = N * H                      # slab rows
    WC = W * Cout                  # slab lane width (128 at test shapes)
    count = float(N * H * W)       # BN normalization count per channel

    # Conv bias is mathematically cancelled by the training-mode BatchNorm that
    # immediately follows each conv, so it is not passed into the kernel.
    del b1, b2

    # Pad Cin so conv1's slab / K dimension is lane-dense (16 * 8 = 128 here).
    cin_p = _round_up(Cin, 8)

    # NCHW -> (N*H, W*cin_p) row slab (layout plumbing, plain XLA).
    x = jnp.transpose(x_nchw, (0, 2, 3, 1)).astype(jnp.float32)
    x = jnp.pad(x, ((0, 0), (0, 0), (0, 0), (0, cin_p - Cin)))
    x_slab = x.reshape(R, W * cin_p)

    w1p = jnp.pad(w1, ((0, 0), (0, cin_p - Cin), (0, 0), (0, 0)))
    w1k = _conv_slab_weights(w1p, W)   # (3, W*cin_p, WC) bf16
    w2k = _conv_slab_weights(w2, W)    # (3, WC, WC) bf16

    # Per-channel BN params tiled across x (slab lane index = x*Cout + c).
    g1s = jnp.tile(g1.astype(jnp.float32), W).reshape(1, WC)
    b1s = jnp.tile(be1.astype(jnp.float32), W).reshape(1, WC)
    g2s = jnp.tile(g2.astype(jnp.float32), W).reshape(1, WC)
    b2s = jnp.tile(be2.astype(jnp.float32), W).reshape(1, WC)

    # Fold-over-x matrix: gmat[x*C + c, x2*C + c2] = (c == c2).  A lane row-sum
    # dotted with gmat yields per-channel totals already broadcast across x.
    gmat = jnp.tile(jnp.eye(Cout, dtype=jnp.float32), (W, W))

    def kernel(x_ref, w1_ref, g1_ref, b1_ref, w2_ref, g2_ref, b2_ref, gm_ref,
               out_ref):
        def shifted(slab, o):
            """Rows shifted by o within each image, zero outside (f32)."""
            if o == 0:
                return slab
            k = slab.shape[-1]
            rolled = pltpu.roll(slab, shift=(-o) % R, axis=0)   # XLU rotate
            y = jax.lax.broadcasted_iota(jnp.int32, (R, k), 0) % H
            valid = jnp.logical_and(y + o >= 0, y + o <= H - 1)
            return jnp.where(valid, rolled, 0.0)

        def conv(slab, w_ref):
            # 3 lane-dense MXU dots (one per kernel row dy); bf16 operands,
            # f32 accumulation.  x-shift / channel mix lives inside w_ref[dy].
            acc = jnp.zeros((R, WC), jnp.float32)
            for dy in range(3):
                sh = shifted(slab, dy - 1).astype(jnp.bfloat16)
                acc = acc + jnp.dot(sh, w_ref[dy],
                                    preferred_element_type=jnp.float32)
            return acc

        def bn_relu(z, g_ref, b_ref):
            # Training-mode BatchNorm (biased var) + ReLU on a (R, WC) slab.
            # Stats on the MXU: ones-row dot over [z | z*z] (row sums), then a
            # dot with gm_ref folds over x and re-broadcasts per-channel sums.
            zz = jnp.concatenate([z, z * z], axis=1)                     # (R, 2WC)
            cs = jnp.dot(jnp.ones((1, R), jnp.float32), zz,
                         preferred_element_type=jnp.float32)             # (1, 2WC)
            both = jnp.concatenate([cs[:, :WC], cs[:, WC:]], axis=0)     # (2, WC)
            tot = jnp.dot(both, gm_ref[...],
                          preferred_element_type=jnp.float32)            # (2, WC)
            mean = tot[0:1, :] * (1.0 / count)
            var = jnp.maximum(tot[1:2, :] * (1.0 / count) - mean * mean, 0.0)
            scale = g_ref[...] * jax.lax.rsqrt(var + EPS)                # EUP
            shift = b_ref[...] - mean * scale
            return jnp.maximum(z * scale + shift, 0.0)

        a1 = bn_relu(conv(x_ref[...], w1_ref), g1_ref, b1_ref)
        a2 = bn_relu(conv(a1, w2_ref), g2_ref, b2_ref)
        out_ref[...] = a2                     # unmasked lane-dense (R, WC) store

    vmem = pl.BlockSpec(memory_space=pltpu.MemorySpace.VMEM)
    out_slab = pl.pallas_call(
        kernel,
        out_shape=jax.ShapeDtypeStruct((R, WC), jnp.float32),
        in_specs=[vmem] * 8,
        out_specs=vmem,
    )(x_slab, w1k, g1s, b1s, w2k, g2s, b2s, gmat)

    out = out_slab.reshape(N, H, W, Cout)
    return jnp.transpose(out, (0, 3, 1, 2))   # back to NCHW


def reference_forward(x, w1, b1, g1, be1, w2, b2, g2, be2):
    """Pure-JAX reference (NCHW, matches PyTorch training-mode forward, f32)."""
    def conv(x, w, b):
        y = jax.lax.conv_general_dilated(
            x, w, window_strides=(1, 1), padding=((1, 1), (1, 1)),
            dimension_numbers=("NCHW", "OIHW", "NCHW"))
        return y + b.reshape(1, -1, 1, 1)

    def bn_relu(z, g, be):
        m = jnp.mean(z, axis=(0, 2, 3), keepdims=True)
        v = jnp.mean((z - m) ** 2, axis=(0, 2, 3), keepdims=True)
        y = (z - m) * jax.lax.rsqrt(v + EPS)
        y = y * g.reshape(1, -1, 1, 1) + be.reshape(1, -1, 1, 1)
        return jnp.maximum(y, 0.0)

    a = bn_relu(conv(x, w1, b1), g1, be1)
    return bn_relu(conv(a, w2, b2), g2, be2)


if __name__ == "__main__":
    N, Cin, Cout, H, W = 2, 4, 8, 16, 16

    key = jax.random.PRNGKey(0)
    k = jax.random.split(key, 5)
    x = jax.random.normal(k[0], (N, Cin, H, W), jnp.float32)

    # Deterministic parameter init (shapes from nn.Conv2d / nn.BatchNorm2d).
    w1 = 0.1 * jax.random.normal(k[1], (Cout, Cin, 3, 3), jnp.float32)
    b1 = 0.1 * jax.random.normal(k[2], (Cout,), jnp.float32)
    w2 = 0.1 * jax.random.normal(k[3], (Cout, Cout, 3, 3), jnp.float32)
    b2 = 0.1 * jax.random.normal(k[4], (Cout,), jnp.float32)
    g1 = jnp.ones((Cout,), jnp.float32)    # BatchNorm gamma init
    be1 = jnp.zeros((Cout,), jnp.float32)  # BatchNorm beta init
    g2 = jnp.ones((Cout,), jnp.float32)
    be2 = jnp.zeros((Cout,), jnp.float32)

    out = double_conv_bn_relu(x, w1, b1, g1, be1, w2, b2, g2, be2)
    out = jax.block_until_ready(out)

    ref = reference_forward(x, w1, b1, g1, be1, w2, b2, g2, be2)
    ref = jax.block_until_ready(ref)

    max_err = float(jnp.max(jnp.abs(out - ref)))
    assert out.shape == (N, Cout, H, W), out.shape
    # bf16 MXU operands (f32 reference) -> allow 2e-2 absolute error.
    assert max_err < 2e-2, f"max abs error too large: {max_err}"

    print("KERNEL_OK")
</pallas_src>

<mosaic_0001>
module attributes {stable_mosaic.version = 11 : i64} {
  func.func @kernel(%arg0: memref<32x128xf32, #tpu.memory_space<vmem>>, %arg1: memref<3x128x128xbf16, #tpu.memory_space<vmem>>, %arg2: memref<1x128xf32, #tpu.memory_space<vmem>>, %arg3: memref<1x128xf32, #tpu.memory_space<vmem>>, %arg4: memref<3x128x128xbf16, #tpu.memory_space<vmem>>, %arg5: memref<1x128xf32, #tpu.memory_space<vmem>>, %arg6: memref<1x128xf32, #tpu.memory_space<vmem>>, %arg7: memref<128x128xf32, #tpu.memory_space<vmem>>, %arg8: memref<32x128xf32, #tpu.memory_space<vmem>>) attributes {dimension_semantics = [], scalar_prefetch = 0 : i64, scratch_operands = 0 : i64, tpu.core_type = #tpu.core_type<tc>} {
    %c0 = arith.constant 0 : index
    %c0_0 = arith.constant 0 : index
    %0 = vector.load %arg0[%c0, %c0_0] : memref<32x128xf32, #tpu.memory_space<vmem>>, vector<32x128xf32>
    %cst = arith.constant 0.000000e+00 : f32
    %1 = vector.broadcast %cst : f32 to vector<32x128xf32>
    %c1_i32 = arith.constant 1 : i32
    %2 = tpu.dynamic_rotate %0 by %c1_i32 dim 0 : vector<32x128xf32>, i32 -> vector<32x128xf32>
    %3 = tpu.iota {dimensions = array<i32: 0>} : vector<32x128xi32>
    %c16_i32 = arith.constant 16 : i32
    %c0_i32 = arith.constant 0 : i32
    %4 = arith.cmpi eq, %c16_i32, %c0_i32 : i32
    %c1_i32_1 = arith.constant 1 : i32
    %5 = arith.select %4, %c1_i32_1, %c16_i32 : i32
    %6 = vector.broadcast %5 : i32 to vector<32x128xi32>
    %7 = arith.remsi %3, %6 : vector<32x128xi32>
    %c0_i32_2 = arith.constant 0 : i32
    %8 = vector.broadcast %c0_i32_2 : i32 to vector<32x128xi32>
    %9 = arith.cmpi ne, %7, %8 : vector<32x128xi32>
    %c0_i32_3 = arith.constant 0 : i32
    %10 = vector.broadcast %c0_i32_3 : i32 to vector<32x128xi32>
    %11 = arith.cmpi slt, %7, %10 : vector<32x128xi32>
    %c0_i32_4 = arith.constant 0 : i32
    %12 = arith.cmpi slt, %5, %c0_i32_4 : i32
    %13 = vector.broadcast %12 : i1 to vector<32x128xi1>
    %14 = vector.broadcast %13 : vector<32x128xi1> to vector<32x128xi1>
    %15 = arith.xori %11, %14 : vector<32x128xi1>
    %16 = arith.andi %15, %9 : vector<32x128xi1>
    %17 = vector.broadcast %5 : i32 to vector<32x128xi32>
    %18 = arith.addi %7, %17 : vector<32x128xi32>
    %19 = arith.select %16, %18, %7 : vector<32x128xi1>, vector<32x128xi32>
    %c-1_i32 = arith.constant -1 : i32
    %20 = vector.broadcast %c-1_i32 : i32 to vector<32x128xi32>
    %21 = arith.addi %19, %20 : vector<32x128xi32>
    %c0_i32_5 = arith.constant 0 : i32
    %22 = vector.broadcast %c0_i32_5 : i32 to vector<32x128xi32>
    %23 = arith.cmpi sge, %21, %22 : vector<32x128xi32>
    %c-1_i32_6 = arith.constant -1 : i32
    %24 = vector.broadcast %c-1_i32_6 : i32 to vector<32x128xi32>
    %25 = arith.addi %19, %24 : vector<32x128xi32>
    %c15_i32 = arith.constant 15 : i32
    %26 = vector.broadcast %c15_i32 : i32 to vector<32x128xi32>
    %27 = arith.cmpi sle, %25, %26 : vector<32x128xi32>
    %28 = arith.andi %23, %27 : vector<32x128xi1>
    %cst_7 = arith.constant 0.000000e+00 : f32
    %29 = vector.broadcast %cst_7 : f32 to vector<32x128xf32>
    %30 = arith.select %28, %2, %29 : vector<32x128xi1>, vector<32x128xf32>
    %31 = arith.truncf %30 : vector<32x128xf32> to vector<32x128xbf16>
    %c0_8 = arith.constant 0 : index
    %c0_9 = arith.constant 0 : index
    %c0_10 = arith.constant 0 : index
    %32 = vector.load %arg1[%c0_8, %c0_9, %c0_10] : memref<3x128x128xbf16, #tpu.memory_space<vmem>>, vector<1x128x128xbf16>
    %33 = vector.shape_cast %32 : vector<1x128x128xbf16> to vector<128x128xbf16>
    %cst_11 = arith.constant dense<0.000000e+00> : vector<32x128xf32>
    %34 = tpu.matmul %31, %33, %cst_11 {dimension_numbers = #tpu.dot_dimension_numbers<[1], [0], [0], [1], [0, 0, 1, 1], [], []>} : vector<32x128xbf16>, vector<128x128xbf16>, vector<32x128xf32> -> vector<32x128xf32>
    %35 = arith.addf %1, %34 : vector<32x128xf32>
    %36 = arith.truncf %0 : vector<32x128xf32> to vector<32x128xbf16>
    %c1 = arith.constant 1 : index
    %c0_12 = arith.constant 0 : index
    %c0_13 = arith.constant 0 : index
    %37 = vector.load %arg1[%c1, %c0_12, %c0_13] : memref<3x128x128xbf16, #tpu.memory_space<vmem>>, vector<1x128x128xbf16>
    %38 = vector.shape_cast %37 : vector<1x128x128xbf16> to vector<128x128xbf16>
    %cst_14 = arith.constant dense<0.000000e+00> : vector<32x128xf32>
    %39 = tpu.matmul %36, %38, %cst_14 {dimension_numbers = #tpu.dot_dimension_numbers<[1], [0], [0], [1], [0, 0, 1, 1], [], []>} : vector<32x128xbf16>, vector<128x128xbf16>, vector<32x128xf32> -> vector<32x128xf32>
    %40 = arith.addf %35, %39 : vector<32x128xf32>
    %c31_i32 = arith.constant 31 : i32
    %41 = tpu.dynamic_rotate %0 by %c31_i32 dim 0 : vector<32x128xf32>, i32 -> vector<32x128xf32>
    %42 = tpu.iota {dimensions = array<i32: 0>} : vector<32x128xi32>
    %c16_i32_15 = arith.constant 16 : i32
    %c0_i32_16 = arith.constant 0 : i32
    %43 = arith.cmpi eq, %c16_i32_15, %c0_i32_16 : i32
    %c1_i32_17 = arith.constant 1 : i32
    %44 = arith.select %43, %c1_i32_17, %c16_i32_15 : i32
    %45 = vector.broadcast %44 : i32 to vector<32x128xi32>
    %46 = arith.remsi %42, %45 : vector<32x128xi32>
    %c0_i32_18 = arith.constant 0 : i32
    %47 = vector.broadcast %c0_i32_18 : i32 to vector<32x128xi32>
    %48 = arith.cmpi ne, %46, %47 : vector<32x128xi32>
    %c0_i32_19 = arith.constant 0 : i32
    %49 = vector.broadcast %c0_i32_19 : i32 to vector<32x128xi32>
    %50 = arith.cmpi slt, %46, %49 : vector<32x128xi32>
    %c0_i32_20 = arith.constant 0 : i32
    %51 = arith.cmpi slt, %44, %c0_i32_20 : i32
    %52 = vector.broadcast %51 : i1 to vector<32x128xi1>
    %53 = vector.broadcast %52 : vector<32x128xi1> to vector<32x128xi1>
    %54 = arith.xori %50, %53 : vector<32x128xi1>
    %55 = arith.andi %54, %48 : vector<32x128xi1>
    %56 = vector.broadcast %44 : i32 to vector<32x128xi32>
    %57 = arith.addi %46, %56 : vector<32x128xi32>
    %58 = arith.select %55, %57, %46 : vector<32x128xi1>, vector<32x128xi32>
    %c1_i32_21 = arith.constant 1 : i32
    %59 = vector.broadcast %c1_i32_21 : i32 to vector<32x128xi32>
    %60 = arith.addi %58, %59 : vector<32x128xi32>
    %c0_i32_22 = arith.constant 0 : i32
    %61 = vector.broadcast %c0_i32_22 : i32 to vector<32x128xi32>
    %62 = arith.cmpi sge, %60, %61 : vector<32x128xi32>
    %c1_i32_23 = arith.constant 1 : i32
    %63 = vector.broadcast %c1_i32_23 : i32 to vector<32x128xi32>
    %64 = arith.addi %58, %63 : vector<32x128xi32>
    %c15_i32_24 = arith.constant 15 : i32
    %65 = vector.broadcast %c15_i32_24 : i32 to vector<32x128xi32>
    %66 = arith.cmpi sle, %64, %65 : vector<32x128xi32>
    %67 = arith.andi %62, %66 : vector<32x128xi1>
    %cst_25 = arith.constant 0.000000e+00 : f32
    %68 = vector.broadcast %cst_25 : f32 to vector<32x128xf32>
    %69 = arith.select %67, %41, %68 : vector<32x128xi1>, vector<32x128xf32>
    %70 = arith.truncf %69 : vector<32x128xf32> to vector<32x128xbf16>
    %c2 = arith.constant 2 : index
    %c0_26 = arith.constant 0 : index
    %c0_27 = arith.constant 0 : index
    %71 = vector.load %arg1[%c2, %c0_26, %c0_27] : memref<3x128x128xbf16, #tpu.memory_space<vmem>>, vector<1x128x128xbf16>
    %72 = vector.shape_cast %71 : vector<1x128x128xbf16> to vector<128x128xbf16>
    %cst_28 = arith.constant dense<0.000000e+00> : vector<32x128xf32>
    %73 = tpu.matmul %70, %72, %cst_28 {dimension_numbers = #tpu.dot_dimension_numbers<[1], [0], [0], [1], [0, 0, 1, 1], [], []>} : vector<32x128xbf16>, vector<128x128xbf16>, vector<32x128xf32> -> vector<32x128xf32>
    %74 = arith.addf %40, %73 : vector<32x128xf32>
    %75 = arith.mulf %74, %74 : vector<32x128xf32>
    %76 = tpu.concatenate %74, %75 in 1 : vector<32x128xf32>, vector<32x128xf32> -> vector<32x256xf32>
    %cst_29 = arith.constant 1.000000e+00 : f32
    %77 = vector.broadcast %cst_29 : f32 to vector<1x32xf32>
    %cst_30 = arith.constant dense<0.000000e+00> : vector<1x256xf32>
    %78 = tpu.matmul %77, %76, %cst_30 {dimension_numbers = #tpu.dot_dimension_numbers<[1], [0], [0], [1], [0, 0, 1, 1], [], []>} : vector<1x32xf32>, vector<32x256xf32>, vector<1x256xf32> -> vector<1x256xf32>
    %79 = vector.extract_strided_slice %78 {offsets = [0, 0], sizes = [1, 128], strides = [1, 1]} : vector<1x256xf32> to vector<1x128xf32>
    %80 = vector.extract_strided_slice %78 {offsets = [0, 128], sizes = [1, 128], strides = [1, 1]} : vector<1x256xf32> to vector<1x128xf32>
    %81 = tpu.concatenate %79, %80 in 0 : vector<1x128xf32>, vector<1x128xf32> -> vector<2x128xf32>
    %c0_31 = arith.constant 0 : index
    %c0_32 = arith.constant 0 : index
    %82 = vector.load %arg7[%c0_31, %c0_32] : memref<128x128xf32, #tpu.memory_space<vmem>>, vector<128x128xf32>
    %cst_33 = arith.constant dense<0.000000e+00> : vector<2x128xf32>
    %83 = tpu.matmul %81, %82, %cst_33 {dimension_numbers = #tpu.dot_dimension_numbers<[1], [0], [0], [1], [0, 0, 1, 1], [], []>} : vector<2x128xf32>, vector<128x128xf32>, vector<2x128xf32> -> vector<2x128xf32>
    %84 = vector.extract_strided_slice %83 {offsets = [0, 0], sizes = [1, 128], strides = [1, 1]} : vector<2x128xf32> to vector<1x128xf32>
    %cst_34 = arith.constant 0.001953125 : f32
    %85 = vector.broadcast %cst_34 : f32 to vector<1x128xf32>
    %86 = arith.mulf %84, %85 : vector<1x128xf32>
    %87 = vector.extract_strided_slice %83 {offsets = [1, 0], sizes = [1, 128], strides = [1, 1]} : vector<2x128xf32> to vector<1x128xf32>
    %cst_35 = arith.constant 0.001953125 : f32
    %88 = vector.broadcast %cst_35 : f32 to vector<1x128xf32>
    %89 = arith.mulf %87, %88 : vector<1x128xf32>
    %90 = arith.mulf %86, %86 : vector<1x128xf32>
    %91 = arith.subf %89, %90 : vector<1x128xf32>
    %cst_36 = arith.constant 0.000000e+00 : f32
    %92 = vector.broadcast %cst_36 : f32 to vector<1x128xf32>
    %93 = arith.maximumf %91, %92 : vector<1x128xf32>
    %c0_37 = arith.constant 0 : index
    %c0_38 = arith.constant 0 : index
    %94 = vector.load %arg2[%c0_37, %c0_38] : memref<1x128xf32, #tpu.memory_space<vmem>>, vector<1x128xf32>
    %cst_39 = arith.constant 9.99999974E-6 : f32
    %95 = vector.broadcast %cst_39 : f32 to vector<1x128xf32>
    %96 = arith.addf %93, %95 : vector<1x128xf32>
    %97 = math.rsqrt %96 : vector<1x128xf32>
    %98 = arith.mulf %94, %97 : vector<1x128xf32>
    %c0_40 = arith.constant 0 : index
    %c0_41 = arith.constant 0 : index
    %99 = vector.load %arg3[%c0_40, %c0_41] : memref<1x128xf32, #tpu.memory_space<vmem>>, vector<1x128xf32>
    %100 = arith.mulf %86, %98 : vector<1x128xf32>
    %101 = arith.subf %99, %100 : vector<1x128xf32>
    %102 = vector.broadcast %98 : vector<1x128xf32> to vector<32x128xf32>
    %103 = arith.mulf %74, %102 : vector<32x128xf32>
    %104 = vector.broadcast %101 : vector<1x128xf32> to vector<32x128xf32>
    %105 = arith.addf %103, %104 : vector<32x128xf32>
    %cst_42 = arith.constant 0.000000e+00 : f32
    %106 = vector.broadcast %cst_42 : f32 to vector<32x128xf32>
    %107 = arith.maximumf %105, %106 : vector<32x128xf32>
    %cst_43 = arith.constant 0.000000e+00 : f32
    %108 = vector.broadcast %cst_43 : f32 to vector<32x128xf32>
    %c1_i32_44 = arith.constant 1 : i32
    %109 = tpu.dynamic_rotate %107 by %c1_i32_44 dim 0 : vector<32x128xf32>, i32 -> vector<32x128xf32>
    %110 = tpu.iota {dimensions = array<i32: 0>} : vector<32x128xi32>
    %c16_i32_45 = arith.constant 16 : i32
    %c0_i32_46 = arith.constant 0 : i32
    %111 = arith.cmpi eq, %c16_i32_45, %c0_i32_46 : i32
    %c1_i32_47 = arith.constant 1 : i32
    %112 = arith.select %111, %c1_i32_47, %c16_i32_45 : i32
    %113 = vector.broadcast %112 : i32 to vector<32x128xi32>
    %114 = arith.remsi %110, %113 : vector<32x128xi32>
    %c0_i32_48 = arith.constant 0 : i32
    %115 = vector.broadcast %c0_i32_48 : i32 to vector<32x128xi32>
    %116 = arith.cmpi ne, %114, %115 : vector<32x128xi32>
    %c0_i32_49 = arith.constant 0 : i32
    %117 = vector.broadcast %c0_i32_49 : i32 to vector<32x128xi32>
    %118 = arith.cmpi slt, %114, %117 : vector<32x128xi32>
    %c0_i32_50 = arith.constant 0 : i32
    %119 = arith.cmpi slt, %112, %c0_i32_50 : i32
    %120 = vector.broadcast %119 : i1 to vector<32x128xi1>
    %121 = vector.broadcast %120 : vector<32x128xi1> to vector<32x128xi1>
    %122 = arith.xori %118, %121 : vector<32x128xi1>
    %123 = arith.andi %122, %116 : vector<32x128xi1>
    %124 = vector.broadcast %112 : i32 to vector<32x128xi32>
    %125 = arith.addi %114, %124 : vector<32x128xi32>
    %126 = arith.select %123, %125, %114 : vector<32x128xi1>, vector<32x128xi32>
    %c-1_i32_51 = arith.constant -1 : i32
    %127 = vector.broadcast %c-1_i32_51 : i32 to vector<32x128xi32>
    %128 = arith.addi %126, %127 : vector<32x128xi32>
    %c0_i32_52 = arith.constant 0 : i32
    %129 = vector.broadcast %c0_i32_52 : i32 to vector<32x128xi32>
    %130 = arith.cmpi sge, %128, %129 : vector<32x128xi32>
    %c-1_i32_53 = arith.constant -1 : i32
    %131 = vector.broadcast %c-1_i32_53 : i32 to vector<32x128xi32>
    %132 = arith.addi %126, %131 : vector<32x128xi32>
    %c15_i32_54 = arith.constant 15 : i32
    %133 = vector.broadcast %c15_i32_54 : i32 to vector<32x128xi32>
    %134 = arith.cmpi sle, %132, %133 : vector<32x128xi32>
    %135 = arith.andi %130, %134 : vector<32x128xi1>
    %cst_55 = arith.constant 0.000000e+00 : f32
    %136 = vector.broadcast %cst_55 : f32 to vector<32x128xf32>
    %137 = arith.select %135, %109, %136 : vector<32x128xi1>, vector<32x128xf32>
    %138 = arith.truncf %137 : vector<32x128xf32> to vector<32x128xbf16>
    %c0_56 = arith.constant 0 : index
    %c0_57 = arith.constant 0 : index
    %c0_58 = arith.constant 0 : index
    %139 = vector.load %arg4[%c0_56, %c0_57, %c0_58] : memref<3x128x128xbf16, #tpu.memory_space<vmem>>, vector<1x128x128xbf16>
    %140 = vector.shape_cast %139 : vector<1x128x128xbf16> to vector<128x128xbf16>
    %cst_59 = arith.constant dense<0.000000e+00> : vector<32x128xf32>
    %141 = tpu.matmul %138, %140, %cst_59 {dimension_numbers = #tpu.dot_dimension_numbers<[1], [0], [0], [1], [0, 0, 1, 1], [], []>} : vector<32x128xbf16>, vector<128x128xbf16>, vector<32x128xf32> -> vector<32x128xf32>
    %142 = arith.addf %108, %141 : vector<32x128xf32>
    %143 = arith.truncf %107 : vector<32x128xf32> to vector<32x128xbf16>
    %c1_60 = arith.constant 1 : index
    %c0_61 = arith.constant 0 : index
    %c0_62 = arith.constant 0 : index
    %144 = vector.load %arg4[%c1_60, %c0_61, %c0_62] : memref<3x128x128xbf16, #tpu.memory_space<vmem>>, vector<1x128x128xbf16>
    %145 = vector.shape_cast %144 : vector<1x128x128xbf16> to vector<128x128xbf16>
    %cst_63 = arith.constant dense<0.000000e+00> : vector<32x128xf32>
    %146 = tpu.matmul %143, %145, %cst_63 {dimension_numbers = #tpu.dot_dimension_numbers<[1], [0], [0], [1], [0, 0, 1, 1], [], []>} : vector<32x128xbf16>, vector<128x128xbf16>, vector<32x128xf32> -> vector<32x128xf32>
    %147 = arith.addf %142, %146 : vector<32x128xf32>
    %c31_i32_64 = arith.constant 31 : i32
    %148 = tpu.dynamic_rotate %107 by %c31_i32_64 dim 0 : vector<32x128xf32>, i32 -> vector<32x128xf32>
    %149 = tpu.iota {dimensions = array<i32: 0>} : vector<32x128xi32>
    %c16_i32_65 = arith.constant 16 : i32
    %c0_i32_66 = arith.constant 0 : i32
    %150 = arith.cmpi eq, %c16_i32_65, %c0_i32_66 : i32
    %c1_i32_67 = arith.constant 1 : i32
    %151 = arith.select %150, %c1_i32_67, %c16_i32_65 : i32
    %152 = vector.broadcast %151 : i32 to vector<32x128xi32>
    %153 = arith.remsi %149, %152 : vector<32x128xi32>
    %c0_i32_68 = arith.constant 0 : i32
    %154 = vector.broadcast %c0_i32_68 : i32 to vector<32x128xi32>
    %155 = arith.cmpi ne, %153, %154 : vector<32x128xi32>
    %c0_i32_69 = arith.constant 0 : i32
    %156 = vector.broadcast %c0_i32_69 : i32 to vector<32x128xi32>
    %157 = arith.cmpi slt, %153, %156 : vector<32x128xi32>
    %c0_i32_70 = arith.constant 0 : i32
    %158 = arith.cmpi slt, %151, %c0_i32_70 : i32
    %159 = vector.broadcast %158 : i1 to vector<32x128xi1>
    %160 = vector.broadcast %159 : vector<32x128xi1> to vector<32x128xi1>
    %161 = arith.xori %157, %160 : vector<32x128xi1>
    %162 = arith.andi %161, %155 : vector<32x128xi1>
    %163 = vector.broadcast %151 : i32 to vector<32x128xi32>
    %164 = arith.addi %153, %163 : vector<32x128xi32>
    %165 = arith.select %162, %164, %153 : vector<32x128xi1>, vector<32x128xi32>
    %c1_i32_71 = arith.constant 1 : i32
    %166 = vector.broadcast %c1_i32_71 : i32 to vector<32x128xi32>
    %167 = arith.addi %165, %166 : vector<32x128xi32>
    %c0_i32_72 = arith.constant 0 : i32
    %168 = vector.broadcast %c0_i32_72 : i32 to vector<32x128xi32>
    %169 = arith.cmpi sge, %167, %168 : vector<32x128xi32>
    %c1_i32_73 = arith.constant 1 : i32
    %170 = vector.broadcast %c1_i32_73 : i32 to vector<32x128xi32>
    %171 = arith.addi %165, %170 : vector<32x128xi32>
    %c15_i32_74 = arith.constant 15 : i32
    %172 = vector.broadcast %c15_i32_74 : i32 to vector<32x128xi32>
    %173 = arith.cmpi sle, %171, %172 : vector<32x128xi32>
    %174 = arith.andi %169, %173 : vector<32x128xi1>
    %cst_75 = arith.constant 0.000000e+00 : f32
    %175 = vector.broadcast %cst_75 : f32 to vector<32x128xf32>
    %176 = arith.select %174, %148, %175 : vector<32x128xi1>, vector<32x128xf32>
    %177 = arith.truncf %176 : vector<32x128xf32> to vector<32x128xbf16>
    %c2_76 = arith.constant 2 : index
    %c0_77 = arith.constant 0 : index
    %c0_78 = arith.constant 0 : index
    %178 = vector.load %arg4[%c2_76, %c0_77, %c0_78] : memref<3x128x128xbf16, #tpu.memory_space<vmem>>, vector<1x128x128xbf16>
    %179 = vector.shape_cast %178 : vector<1x128x128xbf16> to vector<128x128xbf16>
    %cst_79 = arith.constant dense<0.000000e+00> : vector<32x128xf32>
    %180 = tpu.matmul %177, %179, %cst_79 {dimension_numbers = #tpu.dot_dimension_numbers<[1], [0], [0], [1], [0, 0, 1, 1], [], []>} : vector<32x128xbf16>, vector<128x128xbf16>, vector<32x128xf32> -> vector<32x128xf32>
    %181 = arith.addf %147, %180 : vector<32x128xf32>
    %182 = arith.mulf %181, %181 : vector<32x128xf32>
    %183 = tpu.concatenate %181, %182 in 1 : vector<32x128xf32>, vector<32x128xf32> -> vector<32x256xf32>
    %cst_80 = arith.constant 1.000000e+00 : f32
    %184 = vector.broadcast %cst_80 : f32 to vector<1x32xf32>
    %cst_81 = arith.constant dense<0.000000e+00> : vector<1x256xf32>
    %185 = tpu.matmul %184, %183, %cst_81 {dimension_numbers = #tpu.dot_dimension_numbers<[1], [0], [0], [1], [0, 0, 1, 1], [], []>} : vector<1x32xf32>, vector<32x256xf32>, vector<1x256xf32> -> vector<1x256xf32>
    %186 = vector.extract_strided_slice %185 {offsets = [0, 0], sizes = [1, 128], strides = [1, 1]} : vector<1x256xf32> to vector<1x128xf32>
    %187 = vector.extract_strided_slice %185 {offsets = [0, 128], sizes = [1, 128], strides = [1, 1]} : vector<1x256xf32> to vector<1x128xf32>
    %188 = tpu.concatenate %186, %187 in 0 : vector<1x128xf32>, vector<1x128xf32> -> vector<2x128xf32>
    %c0_82 = arith.constant 0 : index
    %c0_83 = arith.constant 0 : index
    %189 = vector.load %arg7[%c0_82, %c0_83] : memref<128x128xf32, #tpu.memory_space<vmem>>, vector<128x128xf32>
    %cst_84 = arith.constant dense<0.000000e+00> : vector<2x128xf32>
    %190 = tpu.matmul %188, %189, %cst_84 {dimension_numbers = #tpu.dot_dimension_numbers<[1], [0], [0], [1], [0, 0, 1, 1], [], []>} : vector<2x128xf32>, vector<128x128xf32>, vector<2x128xf32> -> vector<2x128xf32>
    %191 = vector.extract_strided_slice %190 {offsets = [0, 0], sizes = [1, 128], strides = [1, 1]} : vector<2x128xf32> to vector<1x128xf32>
    %cst_85 = arith.constant 0.001953125 : f32
    %192 = vector.broadcast %cst_85 : f32 to vector<1x128xf32>
    %193 = arith.mulf %191, %192 : vector<1x128xf32>
    %194 = vector.extract_strided_slice %190 {offsets = [1, 0], sizes = [1, 128], strides = [1, 1]} : vector<2x128xf32> to vector<1x128xf32>
    %cst_86 = arith.constant 0.001953125 : f32
    %195 = vector.broadcast %cst_86 : f32 to vector<1x128xf32>
    %196 = arith.mulf %194, %195 : vector<1x128xf32>
    %197 = arith.mulf %193, %193 : vector<1x128xf32>
    %198 = arith.subf %196, %197 : vector<1x128xf32>
    %cst_87 = arith.constant 0.000000e+00 : f32
    %199 = vector.broadcast %cst_87 : f32 to vector<1x128xf32>
    %200 = arith.maximumf %198, %199 : vector<1x128xf32>
    %c0_88 = arith.constant 0 : index
    %c0_89 = arith.constant 0 : index
    %201 = vector.load %arg5[%c0_88, %c0_89] : memref<1x128xf32, #tpu.memory_space<vmem>>, vector<1x128xf32>
    %cst_90 = arith.constant 9.99999974E-6 : f32
    %202 = vector.broadcast %cst_90 : f32 to vector<1x128xf32>
    %203 = arith.addf %200, %202 : vector<1x128xf32>
    %204 = math.rsqrt %203 : vector<1x128xf32>
    %205 = arith.mulf %201, %204 : vector<1x128xf32>
    %c0_91 = arith.constant 0 : index
    %c0_92 = arith.constant 0 : index
    %206 = vector.load %arg6[%c0_91, %c0_92] : memref<1x128xf32, #tpu.memory_space<vmem>>, vector<1x128xf32>
    %207 = arith.mulf %193, %205 : vector<1x128xf32>
    %208 = arith.subf %206, %207 : vector<1x128xf32>
    %209 = vector.broadcast %205 : vector<1x128xf32> to vector<32x128xf32>
    %210 = arith.mulf %181, %209 : vector<32x128xf32>
    %211 = vector.broadcast %208 : vector<1x128xf32> to vector<32x128xf32>
    %212 = arith.addf %210, %211 : vector<32x128xf32>
    %cst_93 = arith.constant 0.000000e+00 : f32
    %213 = vector.broadcast %cst_93 : f32 to vector<32x128xf32>
    %214 = arith.maximumf %212, %213 : vector<32x128xf32>
    %c0_94 = arith.constant 0 : index
    %c0_95 = arith.constant 0 : index
    %215 = vector.load %arg8[%c0_94, %c0_95] : memref<32x128xf32, #tpu.memory_space<vmem>>, vector<32x128xf32>
    tpu.vector_store %arg8[%c0_94, %c0_95], %214 {strides = array<i32>} : memref<32x128xf32, #tpu.memory_space<vmem>>, vector<32x128xf32>,
    return
  }
}

</mosaic_0001>

<llo_original>
// kernel: tpu_custom_call.1
$region0: #{tpu_custom_call.1}
  #allocation0 [shape = 'u32[]', space=smem, size = 0x4, offset = 0x4, fixed_abs, tag = 'smem constant byte address 0x4 - core index']
  #allocation1 [shape = 'u32[144,128]{1,0:T(1,128)}', space=vmem, size = 0x12000, scoped, tag = 'internal scratch']
  %s0 = inlined_call_operand.hbm [shape: f32[32,128], index: 0, kind: input, shape index: {}]
  %s1 = inlined_call_operand.hbm [shape: bf16[3,128,128], index: 1, kind: input, shape index: {}]
  %s2 = inlined_call_operand.vmem [shape: f32[1,128], index: 2, kind: input, shape index: {}]
  %s3 = inlined_call_operand.vmem [shape: f32[1,128], index: 3, kind: input, shape index: {}]
  %s4 = inlined_call_operand.hbm [shape: bf16[3,128,128], index: 4, kind: input, shape index: {}]
  %s5 = inlined_call_operand.vmem [shape: f32[1,128], index: 5, kind: input, shape index: {}]
  %s6 = inlined_call_operand.vmem [shape: f32[1,128], index: 6, kind: input, shape index: {}]
  %s7 = inlined_call_operand.hbm [shape: f32[128,128], index: 7, kind: input, shape index: {}]
  %s8 = inlined_call_operand.hbm [shape: f32[32,128], index: 8, kind: output, shape index: {}]
  %s9 = sld [smem:[#allocation0]]
  $region58: #{tpu_custom_call.1} parent=0
    _
  %s11 = ssub.s32 1, %s9
  %s12 = scalar_select 0, %s11, %s9
  $region1: #{tpu_custom_call.1} parent=0
    #allocation2 [shape = 'u8[16384]{0}', space=vmem, size = 0x4000, scoped, tag = 'input window, operand 0, single buffered']
    #allocation3 [shape = 's32[1]{0}', space=sflag, size = 0x4, scoped, tag = 'scoped memory for tpu_custom_call.1']
    #allocation4 [shape = 's32[1]{0}', space=sflag, size = 0x4, scoped, tag = 'scoped memory for tpu_custom_call.1']
    #allocation5 [shape = 'u8[98304]{0}', space=vmem, size = 0x18000, scoped, tag = 'input window, operand 1, single buffered']
    #allocation6 [shape = 's32[1]{0}', space=sflag, size = 0x4, scoped, tag = 'scoped memory for tpu_custom_call.1']
    #allocation7 [shape = 'u8[98304]{0}', space=vmem, size = 0x18000, scoped, tag = 'input window, operand 4, single buffered']
    #allocation8 [shape = 'u8[65536]{0}', space=vmem, size = 0x10000, scoped, tag = 'input window, operand 7, single buffered']
    #allocation9 [shape = 's32[1]{0}', space=sflag, size = 0x4, scoped, tag = 'scoped memory for tpu_custom_call.1']
    #allocation10 [shape = 'u8[16384]{0}', space=vmem, size = 0x4000, scoped, tag = 'output window, operand 0, single buffered']
    %13 = vsyncpa [#allocation3], 0
    %14 = vsyncpa [#allocation6], 0
    %15 = vsyncpa [#allocation9], 0
    %16 = vsyncpa [#allocation4], 0
    // Predicated region
    $region2: #{tpu_custom_call.1} parent=1 // pred_check
      _
    $region3: #{tpu_custom_call.1} parent=1 // pred_check_branch
      %18 = sbr.rel (0) target = $region5
    $region4: #{tpu_custom_call.1} parent=1 // pred_region
      %s20 = ssub.s32 512, 512
      %21 = vsyncadd [#allocation3], %s20
      %s22 = sshll.u32 [#allocation2], 4
      %s23 = int_to_ptr.vmem [resolvable:$true] %s22
      %28 = dma.hbm_to_vmem [thread:$0]  %s0, 512, %s23, [#allocation3], 128, 128, 8
    $region5: #{tpu_custom_call.1} parent=1 // pred_fallthru
      _
    // Predicated region
    $region6: #{tpu_custom_call.1} parent=1 // pred_check
      _
    $region7: #{tpu_custom_call.1} parent=1 // pred_check_branch
      %30 = sbr.rel (0) target = $region9
    $region8: #{tpu_custom_call.1} parent=1 // pred_region
      %s32 = ssub.s32 3072, 3072
      %33 = vsyncadd [#allocation6], %s32
      %s34 = sshll.u32 [#allocation5], 4
      %s35 = int_to_ptr.vmem [resolvable:$true] %s34
      %40 = dma.hbm_to_vmem [thread:$0]  %s1, 3072, %s35, [#allocation6], 64, 64, 4
    $region9: #{tpu_custom_call.1} parent=1 // pred_fallthru
      _
    // Predicated region
    $region10: #{tpu_custom_call.1} parent=1 // pred_check
      _
    $region11: #{tpu_custom_call.1} parent=1 // pred_check_branch
      %42 = sbr.rel (0) target = $region13
    $region12: #{tpu_custom_call.1} parent=1 // pred_region
      _
    $region13: #{tpu_custom_call.1} parent=1 // pred_fallthru
      _
    // Predicated region
    $region14: #{tpu_custom_call.1} parent=1 // pred_check
      _
    $region15: #{tpu_custom_call.1} parent=1 // pred_check_branch
      %44 = sbr.rel (0) target = $region17
    $region16: #{tpu_custom_call.1} parent=1 // pred_region
      _
    $region17: #{tpu_custom_call.1} parent=1 // pred_fallthru
      _
    // Predicated region
    $region18: #{tpu_custom_call.1} parent=1 // pred_check
      _
    $region19: #{tpu_custom_call.1} parent=1 // pred_check_branch
      %46 = sbr.rel (0) target = $region21
    $region20: #{tpu_custom_call.1} parent=1 // pred_region
      %s48 = ssub.s32 3072, 3072
      %49 = vsyncadd [#allocation6], %s48
      %s50 = sshll.u32 [#allocation7], 4
      %s51 = int_to_ptr.vmem [resolvable:$true] %s50
      %56 = dma.hbm_to_vmem [thread:$0]  %s4, 3072, %s51, [#allocation6], 64, 64, 4
    $region21: #{tpu_custom_call.1} parent=1 // pred_fallthru
      _
    // Predicated region
    $region22: #{tpu_custom_call.1} parent=1 // pred_check
      _
    $region23: #{tpu_custom_call.1} parent=1 // pred_check_branch
      %58 = sbr.rel (0) target = $region25
    $region24: #{tpu_custom_call.1} parent=1 // pred_region
      _
    $region25: #{tpu_custom_call.1} parent=1 // pred_fallthru
      _
    // Predicated region
    $region26: #{tpu_custom_call.1} parent=1 // pred_check
      _
    $region27: #{tpu_custom_call.1} parent=1 // pred_check_branch
      %60 = sbr.rel (0) target = $region29
    $region28: #{tpu_custom_call.1} parent=1 // pred_region
      _
    $region29: #{tpu_custom_call.1} parent=1 // pred_fallthru
      _
    // Predicated region
    $region30: #{tpu_custom_call.1} parent=1 // pred_check
      _
    $region31: #{tpu_custom_call.1} parent=1 // pred_check_branch
      %62 = sbr.rel (0) target = $region33
    $region32: #{tpu_custom_call.1} parent=1 // pred_region
      %s64 = ssub.s32 2048, 2048
      %65 = vsyncadd [#allocation9], %s64
      %s66 = sshll.u32 [#allocation8], 4
      %s67 = int_to_ptr.vmem [resolvable:$true] %s66
      %72 = dma.hbm_to_vmem [thread:$0]  %s7, 2048, %s67, [#allocation9], 128, 128, 8
    $region33: #{tpu_custom_call.1} parent=1 // pred_fallthru
      _
    // Predicated region
    $region34: #{tpu_custom_call.1} parent=1 // pred_check
      _
    $region35: #{tpu_custom_call.1} parent=1 // pred_check_branch
      %74 = sbr.rel (0) target = $region37
    $region36: #{tpu_custom_call.1} parent=1 // pred_region
      %75 = dma.done [#allocation3], 512
    $region37: #{tpu_custom_call.1} parent=1 // pred_fallthru
      _
    // Predicated region
    $region38: #{tpu_custom_call.1} parent=1 // pred_check
      _
    $region39: #{tpu_custom_call.1} parent=1 // pred_check_branch
      %77 = sbr.rel (0) target = $region41
    $region40: #{tpu_custom_call.1} parent=1 // pred_region
      %78 = dma.done [#allocation6], 3072
    $region41: #{tpu_custom_call.1} parent=1 // pred_fallthru
      _
    // Predicated region
    $region42: #{tpu_custom_call.1} parent=1 // pred_check
      _
    $region43: #{tpu_custom_call.1} parent=1 // pred_check_branch
      %80 = sbr.rel (0) target = $region45
    $region44: #{tpu_custom_call.1} parent=1 // pred_region
      %81 = dma.done [#allocation6], 3072
    $region45: #{tpu_custom_call.1} parent=1 // pred_fallthru
      _
    // Predicated region
    $region46: #{tpu_custom_call.1} parent=1 // pred_check
      _
    $region47: #{tpu_custom_call.1} parent=1 // pred_check_branch
      %83 = sbr.rel (0) target = $region49
    $region48: #{tpu_custom_call.1} parent=1 // pred_region
      %84 = dma.done [#allocation9], 2048
    $region49: #{tpu_custom_call.1} parent=1 // pred_fallthru
      _
    %v86 = vld [vmem:[#allocation2] sm:$0xff]
    %v87 = vld [vmem:[#allocation2 + $0x8] sm:$0xff]
    %v88 = vld [vmem:[#allocation2 + $0x10] sm:$0xff]
    %v89 = vld [vmem:[#allocation2 + $0x18] sm:$0xff]
    %v90 = vrot.slane %v86, 7
    %v91 = vrot.slane %v87, 7
    %v92 = vrot.slane %v88, 7
    %v93 = vrot.slane %v89, 7
    %v94 = vlaneseq
    %v95 = vshrl.u32 %v94, 7
    %vm96 = vcmp.lt.s32.totalorder %v95, 1
    %v97 = vsel %vm96, %v92, %v93
    %v98 = vsel %vm96, %v91, %v92
    %v99 = vsel %vm96, %v90, %v91
    %v100 = vsel %vm96, %v93, %v90
    %v101 = vadd.s32 %v95, 8
    %v102 = vadd.s32 %v95, 16
    %v103 = vadd.s32 %v95, 24
    %vm104 = vcmp.lt.s32.totalorder %v95, 0
    %v105 = vsub.s32 0, %v95
    %v106 = vsel %vm104, %v105, %v95
    %v107 = vshrl.u32 %v106, 4
    %v108 = vand.u32 %v106, 15
    %v109 = vsub.s32 0, %v108
    %v110 = vsel %vm104, %v109, %v108
    %vm111 = vcmp.lt.s32.totalorder %v101, 0
    %v112 = vsub.s32 0, %v101
    %v113 = vsel %vm111, %v112, %v101
    %v114 = vshrl.u32 %v113, 4
    %v115 = vand.u32 %v113, 15
    %v116 = vsub.s32 0, %v115
    %v117 = vsel %vm111, %v116, %v115
    %vm118 = vcmp.lt.s32.totalorder %v102, 0
    %v119 = vsub.s32 0, %v102
    %v120 = vsel %vm118, %v119, %v102
    %v121 = vshrl.u32 %v120, 4
    %v122 = vand.u32 %v120, 15
    %v123 = vsub.s32 0, %v122
    %v124 = vsel %vm118, %v123, %v122
    %vm125 = vcmp.lt.s32.totalorder %v103, 0
    %v126 = vsub.s32 0, %v103
    %v127 = vsel %vm125, %v126, %v103
    %v128 = vshrl.u32 %v127, 4
    %v129 = vand.u32 %v127, 15
    %v130 = vsub.s32 0, %v129
    %v131 = vsel %vm125, %v130, %v129
    %vm132 = vcmp.ne.s32.totalorder %v110, 0
    %vm133 = vcmp.ne.s32.totalorder %v117, 0
    %vm134 = vcmp.ne.s32.totalorder %v124, 0
    %vm135 = vcmp.ne.s32.totalorder %v131, 0
    %vm136 = vcmp.lt.s32.totalorder %v110, 0
    %vm137 = vcmp.lt.s32.totalorder %v117, 0
    %vm138 = vcmp.lt.s32.totalorder %v124, 0
    %vm139 = vcmp.lt.s32.totalorder %v131, 0
    %vm140 = vmand %vm136, %vm132
    %vm141 = vmand %vm137, %vm133
    %vm142 = vmand %vm138, %vm134
    %vm143 = vmand %vm139, %vm135
    %v144 = vadd.s32 %v110, 16
    %v145 = vadd.s32 %v117, 16
    %v146 = vadd.s32 %v124, 16
    %v147 = vadd.s32 %v131, 16
    %v148 = vsel %vm140, %v144, %v110
    %v149 = vsel %vm141, %v145, %v117
    %v150 = vsel %vm142, %v146, %v124
    %v151 = vsel %vm143, %v147, %v131
    %v152 = vadd.s32 %v148, 4294967295
    %v153 = vadd.s32 %v149, 4294967295
    %v154 = vadd.s32 %v150, 4294967295
    %v155 = vadd.s32 %v151, 4294967295
    %vm156 = vcmp.ge.s32.totalorder %v152, 0
    %vm157 = vcmp.ge.s32.totalorder %v153, 0
    %vm158 = vcmp.ge.s32.totalorder %v154, 0
    %vm159 = vcmp.ge.s32.totalorder %v155, 0
    %vm160 = vcmp.le.s32.totalorder %v152, 15
    %vm161 = vcmp.le.s32.totalorder %v153, 15
    %vm162 = vcmp.le.s32.totalorder %v154, 15
    %vm163 = vcmp.le.s32.totalorder %v155, 15
    %vm164 = vmand %vm156, %vm160
    %vm165 = vmand %vm157, %vm161
    %vm166 = vmand %vm158, %vm162
    %vm167 = vmand %vm159, %vm163
    %v168 = vsel %vm164, %v100, 0.0
    %v169 = vsel %vm165, %v99, 0.0
    %v170 = vsel %vm166, %v98, 0.0
    %v171 = vsel %vm167, %v97, 0.0
    %v172 = vpack.c.bf16 %v169, %v168
    %v173 = vpack.c.bf16 %v171, %v170
    %v174 = vld [vmem:[#allocation5] sm:$0xf]
    %v175 = vld [vmem:[#allocation5 + $0x4] sm:$0xf]
    %v176 = vld [vmem:[#allocation5 + $0x8] sm:$0xf]
    %v177 = vld [vmem:[#allocation5 + $0xc] sm:$0xf]
    %v178 = vld [vmem:[#allocation5 + $0x10] sm:$0xf]
    %v179 = vld [vmem:[#allocation5 + $0x14] sm:$0xf]
    %v180 = vld [vmem:[#allocation5 + $0x18] sm:$0xf]
    %v181 = vld [vmem:[#allocation5 + $0x1c] sm:$0xf]
    %v182 = vld [vmem:[#allocation5 + $0x20] sm:$0xf]
    %v183 = vld [vmem:[#allocation5 + $0x24] sm:$0xf]
    %v184 = vld [vmem:[#allocation5 + $0x28] sm:$0xf]
    %v185 = vld [vmem:[#allocation5 + $0x2c] sm:$0xf]
    %v186 = vld [vmem:[#allocation5 + $0x30] sm:$0xf]
    %v187 = vld [vmem:[#allocation5 + $0x34] sm:$0xf]
    %v188 = vld [vmem:[#allocation5 + $0x38] sm:$0xf]
    %v189 = vld [vmem:[#allocation5 + $0x3c] sm:$0xf]
    %v190 = vpack.c.bf16 %v87, %v86
    %v191 = vpack.c.bf16 %v89, %v88
    %s192 = scalar_lea.vmem [#allocation5], 64
    %v193 = vld [vmem:[%s192] sm:$0xf]
    %v194 = vld [vmem:[%s192 + $0x4] sm:$0xf]
    %v195 = vld [vmem:[%s192 + $0x8] sm:$0xf]
    %v196 = vld [vmem:[%s192 + $0xc] sm:$0xf]
    %v197 = vld [vmem:[%s192 + $0x10] sm:$0xf]
    %v198 = vld [vmem:[%s192 + $0x14] sm:$0xf]
    %v199 = vld [vmem:[%s192 + $0x18] sm:$0xf]
    %v200 = vld [vmem:[%s192 + $0x1c] sm:$0xf]
    %v201 = vld [vmem:[%s192 + $0x20] sm:$0xf]
    %v202 = vld [vmem:[%s192 + $0x24] sm:$0xf]
    %v203 = vld [vmem:[%s192 + $0x28] sm:$0xf]
    %v204 = vld [vmem:[%s192 + $0x2c] sm:$0xf]
    %v205 = vld [vmem:[%s192 + $0x30] sm:$0xf]
    %v206 = vld [vmem:[%s192 + $0x34] sm:$0xf]
    %v207 = vld [vmem:[%s192 + $0x38] sm:$0xf]
    %v208 = vld [vmem:[%s192 + $0x3c] sm:$0xf]
    %v225 = vunpack.c.l.b16 %v193
    %v226 = vunpack.c.l.b16 %v194
    %v227 = vunpack.c.l.b16 %v195
    %v228 = vunpack.c.l.b16 %v196
    %v229 = vunpack.c.l.b16 %v197
    %v230 = vunpack.c.l.b16 %v198
    %v231 = vunpack.c.l.b16 %v199
    %v232 = vunpack.c.l.b16 %v200
    %v233 = vunpack.c.l.b16 %v201
    %v234 = vunpack.c.l.b16 %v202
    %v235 = vunpack.c.l.b16 %v203
    %v236 = vunpack.c.l.b16 %v204
    %v237 = vunpack.c.l.b16 %v205
    %v238 = vunpack.c.l.b16 %v206
    %v239 = vunpack.c.l.b16 %v207
    %v240 = vunpack.c.l.b16 %v208
    %v241 = vpack.c.b16 %v226, %v225
    %v242 = vpack.c.b16 %v228, %v227
    %v243 = vpack.c.b16 %v230, %v229
    %v244 = vpack.c.b16 %v232, %v231
    %v245 = vpack.c.b16 %v234, %v233
    %v246 = vpack.c.b16 %v236, %v235
    %v247 = vpack.c.b16 %v238, %v237
    %v248 = vpack.c.b16 %v240, %v239
    %257 = vmatprep.subr.bf16.mxu0 0
    %258 = vmatpush1.bf16.msra.mxu0 %v241
    %259 = vmatprep.subr.bf16.mxu0 0
    %260 = vmatpush1.bf16.msra.mxu0 %v242
    %261 = vmatprep.subr.bf16.mxu0 0
    %262 = vmatpush1.bf16.msra.mxu0 %v243
    %263 = vmatprep.subr.bf16.mxu0 0
    %264 = vmatpush1.bf16.msra.mxu0 %v244
    %265 = vmatprep.subr.bf16.mxu0 0
    %266 = vmatpush1.bf16.msra.mxu0 %v245
    %267 = vmatprep.subr.bf16.mxu0 0
    %268 = vmatpush1.bf16.msra.mxu0 %v246
    %269 = vmatprep.subr.bf16.mxu0 0
    %270 = vmatpush1.bf16.msra.mxu0 %v247
    %271 = vmatprep.subr.bf16.mxu0 0
    %272 = vmatpush1.bf16.msra.mxu0 %v248
    %273 = vmatprep.subr.bf16.mxu0 0
    %274 = vmatpush1.bf16.msra.mxu0 0
    %275 = vmatprep.subr.bf16.mxu0 0
    %276 = vmatpush1.bf16.msra.mxu0 0
    %277 = vmatprep.subr.bf16.mxu0 0
    %278 = vmatpush1.bf16.msra.mxu0 0
    %279 = vmatprep.subr.bf16.mxu0 0
    %280 = vmatpush1.bf16.msra.mxu0 0
    %281 = vmatprep.subr.bf16.mxu0 0
    %282 = vmatpush1.bf16.msra.mxu0 0
    %283 = vmatprep.subr.bf16.mxu0 0
    %284 = vmatpush1.bf16.msra.mxu0 0
    %285 = vmatprep.subr.bf16.mxu0 0
    %286 = vmatpush1.bf16.msra.mxu0 0
    %287 = vmatprep.subr.bf16.mxu0 0
    %288 = vmatpush1.bf16.msra.mxu0 0
    %289 = vmatprep.mubr.bf16.mxu0 0
    %290 = vmatmul.mubr.bf16.gmra.mrb[0].mxu0 %v190
    %v291 = vpop.f32.mrb[0].mxu0
    %v292 = vadd.f32 0.0, %v291
    %v293 = vpop.f32.mrb[0].mxu0
    %v294 = vpop.f32.mrb[0].mxu0
    %v295 = vadd.f32 0.0, %v294
    %v296 = vpop.f32.mrb[0].mxu0
    %297 = vmatprep.mubr.bf16.mxu0 0
    %298 = vmatmul.mubr.bf16.gmra.mrb[0].mxu0 %v191
    %v299 = vpop.f32.mrb[0].mxu0
    %v300 = vadd.f32 0.0, %v299
    %v301 = vpop.f32.mrb[0].mxu0
    %v302 = vpop.f32.mrb[0].mxu0
    %v303 = vadd.f32 0.0, %v302
    %v304 = vpop.f32.mrb[0].mxu0
    %305 = vdwg.mxu0
    %v322 = vunpack.c.l.b16 %v174
    %v323 = vunpack.c.l.b16 %v175
    %v324 = vunpack.c.l.b16 %v176
    %v325 = vunpack.c.l.b16 %v177
    %v326 = vunpack.c.l.b16 %v178
    %v327 = vunpack.c.l.b16 %v179
    %v328 = vunpack.c.l.b16 %v180
    %v329 = vunpack.c.l.b16 %v181
    %v330 = vunpack.c.l.b16 %v182
    %v331 = vunpack.c.l.b16 %v183
    %v332 = vunpack.c.l.b16 %v184
    %v333 = vunpack.c.l.b16 %v185
    %v334 = vunpack.c.l.b16 %v186
    %v335 = vunpack.c.l.b16 %v187
    %v336 = vunpack.c.l.b16 %v188
    %v337 = vunpack.c.l.b16 %v189
    %v338 = vpack.c.b16 %v323, %v322
    %v339 = vpack.c.b16 %v325, %v324
    %v340 = vpack.c.b16 %v327, %v326
    %v341 = vpack.c.b16 %v329, %v328
    %v342 = vpack.c.b16 %v331, %v330
    %v343 = vpack.c.b16 %v333, %v332
    %v344 = vpack.c.b16 %v335, %v334
    %v345 = vpack.c.b16 %v337, %v336
    %354 = vmatprep.subr.bf16.mxu0 0
    %355 = vmatpush1.bf16.msra.mxu0 %v338
    %356 = vmatprep.subr.bf16.mxu0 0
    %357 = vmatpush1.bf16.msra.mxu0 %v339
    %358 = vmatprep.subr.bf16.mxu0 0
    %359 = vmatpush1.bf16.msra.mxu0 %v340
    %360 = vmatprep.subr.bf16.mxu0 0
    %361 = vmatpush1.bf16.msra.mxu0 %v341
    %362 = vmatprep.subr.bf16.mxu0 0
    %363 = vmatpush1.bf16.msra.mxu0 %v342
    %364 = vmatprep.subr.bf16.mxu0 0
    %365 = vmatpush1.bf16.msra.mxu0 %v343
    %366 = vmatprep.subr.bf16.mxu0 0
    %367 = vmatpush1.bf16.msra.mxu0 %v344
    %368 = vmatprep.subr.bf16.mxu0 0
    %369 = vmatpush1.bf16.msra.mxu0 %v345
    %370 = vmatprep.subr.bf16.mxu0 0
    %371 = vmatpush1.bf16.msra.mxu0 0
    %372 = vmatprep.subr.bf16.mxu0 0
    %373 = vmatpush1.bf16.msra.mxu0 0
    %374 = vmatprep.subr.bf16.mxu0 0
    %375 = vmatpush1.bf16.msra.mxu0 0
    %376 = vmatprep.subr.bf16.mxu0 0
    %377 = vmatpush1.bf16.msra.mxu0 0
    %378 = vmatprep.subr.bf16.mxu0 0
    %379 = vmatpush1.bf16.msra.mxu0 0
    %380 = vmatprep.subr.bf16.mxu0 0
    %381 = vmatpush1.bf16.msra.mxu0 0
    %382 = vmatprep.subr.bf16.mxu0 0
    %383 = vmatpush1.bf16.msra.mxu0 0
    %384 = vmatprep.subr.bf16.mxu0 0
    %385 = vmatpush1.bf16.msra.mxu0 0
    %386 = vmatprep.mubr.bf16.mxu0 0
    %387 = vmatmul.mubr.bf16.gmra.mrb[0].mxu0 %v172
    %v388 = vpop.f32.mrb[0].mxu0
    %v389 = vadd.f32 %v292, %v388
    %v390 = vpop.f32.mrb[0].mxu0
    %v391 = vpop.f32.mrb[0].mxu0
    %v392 = vadd.f32 %v295, %v391
    %v393 = vpop.f32.mrb[0].mxu0
    %394 = vmatprep.mubr.bf16.mxu0 0
    %395 = vmatmul.mubr.bf16.gmra.mrb[0].mxu0 %v173
    %v396 = vpop.f32.mrb[0].mxu0
    %v397 = vadd.f32 %v300, %v396
    %v398 = vpop.f32.mrb[0].mxu0
    %v399 = vpop.f32.mrb[0].mxu0
    %v400 = vadd.f32 %v303, %v399
    %v401 = vpop.f32.mrb[0].mxu0
    %402 = vdwg.mxu0
    %v403 = vrot.slane %v86, 1
    %v404 = vrot.slane %v87, 1
    %v405 = vrot.slane %v88, 1
    %v406 = vrot.slane %v89, 1
    %vm407 = vcmp.lt.s32.totalorder %v95, 7
    %v408 = vsel %vm407, %v405, %v406
    %v409 = vsel %vm407, %v404, %v405
    %v410 = vsel %vm407, %v403, %v404
    %v411 = vsel %vm407, %v406, %v403
    %v412 = vadd.s32 %v148, 1
    %v413 = vadd.s32 %v149, 1
    %v414 = vadd.s32 %v150, 1
    %v415 = vadd.s32 %v151, 1
    %vm416 = vcmp.ge.s32.totalorder %v412, 0
    %vm417 = vcmp.ge.s32.totalorder %v413, 0
    %vm418 = vcmp.ge.s32.totalorder %v414, 0
    %vm419 = vcmp.ge.s32.totalorder %v415, 0
    %vm420 = vcmp.le.s32.totalorder %v412, 15
    %vm421 = vcmp.le.s32.totalorder %v413, 15
    %vm422 = vcmp.le.s32.totalorder %v414, 15
    %vm423 = vcmp.le.s32.totalorder %v415, 15
    %vm424 = vmand %vm416, %vm420
    %vm425 = vmand %vm417, %vm421
    %vm426 = vmand %vm418, %vm422
    %vm427 = vmand %vm419, %vm423
    %v428 = vsel %vm424, %v410, 0.0
    %v429 = vsel %vm425, %v409, 0.0
    %v430 = vsel %vm426, %v408, 0.0
    %v431 = vsel %vm427, %v411, 0.0
    %v432 = vpack.c.bf16 %v429, %v428
    %v433 = vpack.c.bf16 %v431, %v430
    %s434 = scalar_lea.vmem [#allocation5], 128
    %v435 = vld [vmem:[%s434] sm:$0xf]
    %v436 = vld [vmem:[%s434 + $0x4] sm:$0xf]
    %v437 = vld [vmem:[%s434 + $0x8] sm:$0xf]
    %v438 = vld [vmem:[%s434 + $0xc] sm:$0xf]
    %v439 = vld [vmem:[%s434 + $0x10] sm:$0xf]
    %v440 = vld [vmem:[%s434 + $0x14] sm:$0xf]
    %v441 = vld [vmem:[%s434 + $0x18] sm:$0xf]
    %v442 = vld [vmem:[%s434 + $0x1c] sm:$0xf]
    %v443 = vld [vmem:[%s434 + $0x20] sm:$0xf]
    %v444 = vld [vmem:[%s434 + $0x24] sm:$0xf]
    %v445 = vld [vmem:[%s434 + $0x28] sm:$0xf]
    %v446 = vld [vmem:[%s434 + $0x2c] sm:$0xf]
    %v447 = vld [vmem:[%s434 + $0x30] sm:$0xf]
    %v448 = vld [vmem:[%s434 + $0x34] sm:$0xf]
    %v449 = vld [vmem:[%s434 + $0x38] sm:$0xf]
    %v450 = vld [vmem:[%s434 + $0x3c] sm:$0xf]
    %v467 = vunpack.c.l.b16 %v435
    %v468 = vunpack.c.l.b16 %v436
    %v469 = vunpack.c.l.b16 %v437
    %v470 = vunpack.c.l.b16 %v438
    %v471 = vunpack.c.l.b16 %v439
    %v472 = vunpack.c.l.b16 %v440
    %v473 = vunpack.c.l.b16 %v441
    %v474 = vunpack.c.l.b16 %v442
    %v475 = vunpack.c.l.b16 %v443
    %v476 = vunpack.c.l.b16 %v444
    %v477 = vunpack.c.l.b16 %v445
    %v478 = vunpack.c.l.b16 %v446
    %v479 = vunpack.c.l.b16 %v447
    %v480 = vunpack.c.l.b16 %v448
    %v481 = vunpack.c.l.b16 %v449
    %v482 = vunpack.c.l.b16 %v450
    %v483 = vpack.c.b16 %v468, %v467
    %v484 = vpack.c.b16 %v470, %v469
    %v485 = vpack.c.b16 %v472, %v471
    %v486 = vpack.c.b16 %v474, %v473
    %v487 = vpack.c.b16 %v476, %v475
    %v488 = vpack.c.b16 %v478, %v477
    %v489 = vpack.c.b16 %v480, %v479
    %v490 = vpack.c.b16 %v482, %v481
    %499 = vmatprep.subr.bf16.mxu0 0
    %500 = vmatpush1.bf16.msra.mxu0 %v483
    %501 = vmatprep.subr.bf16.mxu0 0
    %502 = vmatpush1.bf16.msra.mxu0 %v484
    %503 = vmatprep.subr.bf16.mxu0 0
    %504 = vmatpush1.bf16.msra.mxu0 %v485
    %505 = vmatprep.subr.bf16.mxu0 0
    %506 = vmatpush1.bf16.msra.mxu0 %v486
    %507 = vmatprep.subr.bf16.mxu0 0
    %508 = vmatpush1.bf16.msra.mxu0 %v487
    %509 = vmatprep.subr.bf16.mxu0 0
    %510 = vmatpush1.bf16.msra.mxu0 %v488
    %511 = vmatprep.subr.bf16.mxu0 0
    %512 = vmatpush1.bf16.msra.mxu0 %v489
    %513 = vmatprep.subr.bf16.mxu0 0
    %514 = vmatpush1.bf16.msra.mxu0 %v490
    %515 = vmatprep.subr.bf16.mxu0 0
    %516 = vmatpush1.bf16.msra.mxu0 0
    %517 = vmatprep.subr.bf16.mxu0 0
    %518 = vmatpush1.bf16.msra.mxu0 0
    %519 = vmatprep.subr.bf16.mxu0 0
    %520 = vmatpush1.bf16.msra.mxu0 0
    %521 = vmatprep.subr.bf16.mxu0 0
    %522 = vmatpush1.bf16.msra.mxu0 0
    %523 = vmatprep.subr.bf16.mxu0 0
    %524 = vmatpush1.bf16.msra.mxu0 0
    %525 = vmatprep.subr.bf16.mxu0 0
    %526 = vmatpush1.bf16.msra.mxu0 0
    %527 = vmatprep.subr.bf16.mxu0 0
    %528 = vmatpush1.bf16.msra.mxu0 0
    %529 = vmatprep.subr.bf16.mxu0 0
    %530 = vmatpush1.bf16.msra.mxu0 0
    %531 = vmatprep.mubr.bf16.mxu0 0
    %532 = vmatmul.mubr.bf16.gmra.mrb[0].mxu0 %v432
    %v533 = vpop.f32.mrb[0].mxu0
    %v534 = vadd.f32 0.0, %v533
    %v535 = vpop.f32.mrb[0].mxu0
    %v536 = vpop.f32.mrb[0].mxu0
    %v537 = vadd.f32 0.0, %v536
    %v538 = vpop.f32.mrb[0].mxu0
    %539 = vmatprep.mubr.bf16.mxu0 0
    %540 = vmatmul.mubr.bf16.gmra.mrb[0].mxu0 %v433
    %v541 = vpop.f32.mrb[0].mxu0
    %v542 = vadd.f32 0.0, %v541
    %v543 = vpop.f32.mrb[0].mxu0
    %v544 = vpop.f32.mrb[0].mxu0
    %v545 = vadd.f32 0.0, %v544
    %v546 = vpop.f32.mrb[0].mxu0
    %547 = vdwg.mxu0
    %v548 = vadd.f32 %v389, %v534
    %v549 = vadd.f32 %v392, %v537
    %v550 = vadd.f32 %v397, %v542
    %v551 = vadd.f32 %v400, %v545
    %v552 = vmul.f32 %v548, %v548
    %v553 = vmul.f32 %v549, %v549
    %v554 = vmul.f32 %v550, %v550
    %v555 = vmul.f32 %v551, %v551
    %vm556 = vcmask 261120
    %v558 = vsel %vm556, 1.0, 0
    %560 = vmatprep.subr.mxu0 %v552
    %561 = vmatpush1.msra.mxu0 %v548
    %562 = vmatprep.subr.mxu0 %v553
    %563 = vmatpush1.msra.mxu0 %v549
    %564 = vmatprep.subr.mxu0 %v554
    %565 = vmatpush1.msra.mxu0 %v550
    %566 = vmatprep.subr.mxu0 %v555
    %567 = vmatpush1.msra.mxu0 %v551
    %568 = vmatprep.subr.mxu0 0.0
    %569 = vmatpush1.msra.mxu0 0.0
    %570 = vmatprep.subr.mxu0 0.0
    %571 = vmatpush1.msra.mxu0 0.0
    %572 = vmatprep.subr.mxu0 0.0
    %573 = vmatpush1.msra.mxu0 0.0
    %574 = vmatprep.subr.mxu0 0.0
    %575 = vmatpush1.msra.mxu0 0.0
    %576 = vmatprep.subr.mxu0 0.0
    %577 = vmatpush1.msra.mxu0 0.0
    %578 = vmatprep.subr.mxu0 0.0
    %579 = vmatpush1.msra.mxu0 0.0
    %580 = vmatprep.subr.mxu0 0.0
    %581 = vmatpush1.msra.mxu0 0.0
    %582 = vmatprep.subr.mxu0 0.0
    %583 = vmatpush1.msra.mxu0 0.0
    %584 = vmatprep.subr.mxu0 0.0
    %585 = vmatpush1.msra.mxu0 0.0
    %586 = vmatprep.subr.mxu0 0.0
    %587 = vmatpush1.msra.mxu0 0.0
    %588 = vmatprep.subr.mxu0 0.0
    %589 = vmatpush1.msra.mxu0 0.0
    %590 = vmatprep.subr.mxu0 0.0
    %591 = vmatpush1.msra.mxu0 0.0
    %592 = vmatprep.subr.mxu0 0.0
    %593 = vmatpush1.msra.mxu0 0.0
    %594 = vmatprep.subr.mxu0 0.0
    %595 = vmatpush1.msra.mxu0 0.0
    %596 = vmatprep.subr.mxu0 0.0
    %597 = vmatpush1.msra.mxu0 0.0
    %598 = vmatprep.subr.mxu0 0.0
    %599 = vmatpush1.msra.mxu0 0.0
    %600 = vmatprep.subr.mxu0 0.0
    %601 = vmatpush1.msra.mxu0 0.0
    %602 = vmatprep.subr.mxu0 0.0
    %603 = vmatpush1.msra.mxu0 0.0
    %604 = vmatprep.subr.mxu0 0.0
    %605 = vmatpush1.msra.mxu0 0.0
    %606 = vmatprep.subr.mxu0 0.0
    %607 = vmatpush1.msra.mxu0 0.0
    %608 = vmatprep.subr.mxu0 0.0
    %609 = vmatpush1.msra.mxu0 0.0
    %610 = vmatprep.subr.mxu0 0.0
    %611 = vmatpush1.msra.mxu0 0.0
    %612 = vmatprep.subr.mxu0 0.0
    %613 = vmatpush1.msra.mxu0 0.0
    %614 = vmatprep.subr.mxu0 0.0
    %615 = vmatpush1.msra.mxu0 0.0
    %616 = vmatprep.subr.mxu0 0.0
    %617 = vmatpush1.msra.mxu0 0.0
    %618 = vmatprep.subr.mxu0 0.0
    %619 = vmatpush1.msra.mxu0 0.0
    %620 = vmatprep.subr.mxu0 0.0
    %621 = vmatpush1.msra.mxu0 0.0
    %622 = vmatprep.subr.mxu0 0.0
    %623 = vmatpush1.msra.mxu0 0.0
    %624 = vmatprep.mubr.f32.mxu0 0.0
    %625 = vmatmul.mubr.f32.gmra.mrb[0].mxu0 %v558
    %v626 = vpop.f32.mrb[0].mxu0
    %v627 = vadd.f32 0.0, %v626
    %v628 = vpop.f32.mrb[0].mxu0
    %v629 = vadd.f32 0.0, %v628
    %630 = vdwg.mxu0
    %v632 = vrot.slane %v629, 7
    %vm634 = vcmask 1040384
    %v635 = vsel %vm634, %v627, %v632
    %v636 = vld [vmem:[#allocation8] sm:$0xff]
    %v637 = vld [vmem:[#allocation8 + $0x8] sm:$0xff]
    %v638 = vld [vmem:[#allocation8 + $0x10] sm:$0xff]
    %v639 = vld [vmem:[#allocation8 + $0x18] sm:$0xff]
    %v640 = vld [vmem:[#allocation8 + $0x20] sm:$0xff]
    %v641 = vld [vmem:[#allocation8 + $0x28] sm:$0xff]
    %v642 = vld [vmem:[#allocation8 + $0x30] sm:$0xff]
    %v643 = vld [vmem:[#allocation8 + $0x38] sm:$0xff]
    %v644 = vld [vmem:[#allocation8 + $0x40] sm:$0xff]
    %v645 = vld [vmem:[#allocation8 + $0x48] sm:$0xff]
    %v646 = vld [vmem:[#allocation8 + $0x50] sm:$0xff]
    %v647 = vld [vmem:[#allocation8 + $0x58] sm:$0xff]
    %v648 = vld [vmem:[#allocation8 + $0x60] sm:$0xff]
    %v649 = vld [vmem:[#allocation8 + $0x68] sm:$0xff]
    %v650 = vld [vmem:[#allocation8 + $0x70] sm:$0xff]
    %v651 = vld [vmem:[#allocation8 + $0x78] sm:$0xff]
    %652 = vmatprep.subr.mxu0 0.0
    %653 = vmatpush1.msra.mxu0 %v636
    %654 = vmatprep.subr.mxu0 0.0
    %655 = vmatpush1.msra.mxu0 %v637
    %656 = vmatprep.subr.mxu0 0.0
    %657 = vmatpush1.msra.mxu0 %v638
    %658 = vmatprep.subr.mxu0 0.0
    %659 = vmatpush1.msra.mxu0 %v639
    %660 = vmatprep.subr.mxu0 0.0
    %661 = vmatpush1.msra.mxu0 %v640
    %662 = vmatprep.subr.mxu0 0.0
    %663 = vmatpush1.msra.mxu0 %v641
    %664 = vmatprep.subr.mxu0 0.0
    %665 = vmatpush1.msra.mxu0 %v642
    %666 = vmatprep.subr.mxu0 0.0
    %667 = vmatpush1.msra.mxu0 %v643
    %668 = vmatprep.subr.mxu0 0.0
    %669 = vmatpush1.msra.mxu0 %v644
    %670 = vmatprep.subr.mxu0 0.0
    %671 = vmatpush1.msra.mxu0 %v645
    %672 = vmatprep.subr.mxu0 0.0
    %673 = vmatpush1.msra.mxu0 %v646
    %674 = vmatprep.subr.mxu0 0.0
    %675 = vmatpush1.msra.mxu0 %v647
    %676 = vmatprep.subr.mxu0 0.0
    %677 = vmatpush1.msra.mxu0 %v648
    %678 = vmatprep.subr.mxu0 0.0
    %679 = vmatpush1.msra.mxu0 %v649
    %680 = vmatprep.subr.mxu0 0.0
    %681 = vmatpush1.msra.mxu0 %v650
    %682 = vmatprep.subr.mxu0 0.0
    %683 = vmatpush1.msra.mxu0 %v651
    %684 = vmatprep.subr.mxu0 0.0
    %685 = vmatpush1.msra.mxu0 0.0
    %686 = vmatprep.subr.mxu0 0.0
    %687 = vmatpush1.msra.mxu0 0.0
    %688 = vmatprep.subr.mxu0 0.0
    %689 = vmatpush1.msra.mxu0 0.0
    %690 = vmatprep.subr.mxu0 0.0
    %691 = vmatpush1.msra.mxu0 0.0
    %692 = vmatprep.subr.mxu0 0.0
    %693 = vmatpush1.msra.mxu0 0.0
    %694 = vmatprep.subr.mxu0 0.0
    %695 = vmatpush1.msra.mxu0 0.0
    %696 = vmatprep.subr.mxu0 0.0
    %697 = vmatpush1.msra.mxu0 0.0
    %698 = vmatprep.subr.mxu0 0.0
    %699 = vmatpush1.msra.mxu0 0.0
    %700 = vmatprep.subr.mxu0 0.0
    %701 = vmatpush1.msra.mxu0 0.0
    %702 = vmatprep.subr.mxu0 0.0
    %703 = vmatpush1.msra.mxu0 0.0
    %704 = vmatprep.subr.mxu0 0.0
    %705 = vmatpush1.msra.mxu0 0.0
    %706 = vmatprep.subr.mxu0 0.0
    %707 = vmatpush1.msra.mxu0 0.0
    %708 = vmatprep.subr.mxu0 0.0
    %709 = vmatpush1.msra.mxu0 0.0
    %710 = vmatprep.subr.mxu0 0.0
    %711 = vmatpush1.msra.mxu0 0.0
    %712 = vmatprep.subr.mxu0 0.0
    %713 = vmatpush1.msra.mxu0 0.0
    %714 = vmatprep.subr.mxu0 0.0
    %715 = vmatpush1.msra.mxu0 0.0
    %716 = vmatprep.mubr.f32.mxu0 0.0
    %717 = vmatmul.mubr.f32.gmra.mrb[0].mxu0 %v635
    %v718 = vpop.f32.mrb[0].mxu0
    %v719 = vadd.f32 0.0, %v718
    %v720 = vpop.f32.mrb[0].mxu0
    %721 = vdwg.mxu0
    %v722 = vmul.f32 %v719, 0.001953125
    %v723 = vmul.f32 %v722, %v722
    %v725 = vrot.slane %v723, 7
    %v727 = vsub.f32 %v722, %v725
    %v728 = vmax.f32 %v727, 0.0
    %v729 = vld [vmem:[%s2] sm:$0x1]
    %v730 = vadd.f32 %v728, 1e-05
    %v731 = vrsqrt.pop %v730
    %v734 = vunpack.c.l.s4 1966171168
    %v735 = vunpack.c.0.s8 %v734
    %v736 = vlaneseq
    %v737 = vshrl.u32 %v736, 7
    %v738 = vsub.s32 %v735, %v737
    %v739 = vrot.slane %v731, %v738
    %v740 = vcombine.high %v739, %v739
    %v742 = vunpack.c.l.s4 1966171168
    %v743 = vunpack.c.0.s8 %v742
    %v744 = vlaneseq
    %v745 = vshrl.u32 %v744, 7
    %v746 = vsub.s32 %v743, %v745
    %v747 = vrot.slane %v740, %v746
    %v749 = vmul.f32 %v729, %v747
    %v750 = vld [vmem:[%s3] sm:$0x1]
    %v751 = vmul.f32 %v722, %v749
    %v752 = vsub.f32 %v750, %v751
    %v754 = vlaneseq
    %v755 = vshrl.u32 %v754, 7
    %v756 = vsub.s32 0, %v755
    %v757 = vrot.slane %v749, %v756
    %v759 = vmul.f32 %v548, %v757
    %v760 = vmul.f32 %v549, %v757
    %v761 = vmul.f32 %v550, %v757
    %v762 = vmul.f32 %v551, %v757
    %v764 = vlaneseq
    %v765 = vshrl.u32 %v764, 7
    %v766 = vsub.s32 0, %v765
    %v767 = vrot.slane %v752, %v766
    %v769 = vadd.f32 %v759, %v767
    %v770 = vadd.f32 %v760, %v767
    %v771 = vadd.f32 %v761, %v767
    %v772 = vadd.f32 %v762, %v767
    %v773 = vmax.f32 %v769, 0.0
    %v774 = vmax.f32 %v770, 0.0
    %v775 = vmax.f32 %v771, 0.0
    %v776 = vmax.f32 %v772, 0.0
    %v777 = vrot.slane %v773, 7
    %v778 = vrot.slane %v774, 7
    %v779 = vrot.slane %v775, 7
    %v780 = vrot.slane %v776, 7
    %v781 = vsel %vm96, %v779, %v780
    %v782 = vsel %vm96, %v778, %v779
    %v783 = vsel %vm96, %v777, %v778
    %v784 = vsel %vm96, %v780, %v777
    %v785 = vsel %vm164, %v784, 0.0
    %v786 = vsel %vm165, %v783, 0.0
    %v787 = vsel %vm166, %v782, 0.0
    %v788 = vsel %vm167, %v781, 0.0
    %v789 = vpack.c.bf16 %v786, %v785
    %v790 = vpack.c.bf16 %v788, %v787
    %v791 = vld [vmem:[#allocation7] sm:$0xf]
    %v792 = vld [vmem:[#allocation7 + $0x4] sm:$0xf]
    %v793 = vld [vmem:[#allocation7 + $0x8] sm:$0xf]
    %v794 = vld [vmem:[#allocation7 + $0xc] sm:$0xf]
    %v795 = vld [vmem:[#allocation7 + $0x10] sm:$0xf]
    %v796 = vld [vmem:[#allocation7 + $0x14] sm:$0xf]
    %v797 = vld [vmem:[#allocation7 + $0x18] sm:$0xf]
    %v798 = vld [vmem:[#allocation7 + $0x1c] sm:$0xf]
    %v799 = vld [vmem:[#allocation7 + $0x20] sm:$0xf]
    %v800 = vld [vmem:[#allocation7 + $0x24] sm:$0xf]
    %v801 = vld [vmem:[#allocation7 + $0x28] sm:$0xf]
    %v802 = vld [vmem:[#allocation7 + $0x2c] sm:$0xf]
    %v803 = vld [vmem:[#allocation7 + $0x30] sm:$0xf]
    %v804 = vld [vmem:[#allocation7 + $0x34] sm:$0xf]
    %v805 = vld [vmem:[#allocation7 + $0x38] sm:$0xf]
    %v806 = vld [vmem:[#allocation7 + $0x3c] sm:$0xf]
    %v807 = vpack.c.bf16 %v774, %v773
    %v808 = vpack.c.bf16 %v776, %v775
    %s809 = scalar_lea.vmem [#allocation7], 64
    %v810 = vld [vmem:[%s809] sm:$0xf]
    %v811 = vld [vmem:[%s809 + $0x4] sm:$0xf]
    %v812 = vld [vmem:[%s809 + $0x8] sm:$0xf]
    %v813 = vld [vmem:[%s809 + $0xc] sm:$0xf]
    %v814 = vld [vmem:[%s809 + $0x10] sm:$0xf]
    %v815 = vld [vmem:[%s809 + $0x14] sm:$0xf]
    %v816 = vld [vmem:[%s809 + $0x18] sm:$0xf]
    %v817 = vld [vmem:[%s809 + $0x1c] sm:$0xf]
    %v818 = vld [vmem:[%s809 + $0x20] sm:$0xf]
    %v819 = vld [vmem:[%s809 + $0x24] sm:$0xf]
    %v820 = vld [vmem:[%s809 + $0x28] sm:$0xf]
    %v821 = vld [vmem:[%s809 + $0x2c] sm:$0xf]
    %v822 = vld [vmem:[%s809 + $0x30] sm:$0xf]
    %v823 = vld [vmem:[%s809 + $0x34] sm:$0xf]
    %v824 = vld [vmem:[%s809 + $0x38] sm:$0xf]
    %v825 = vld [vmem:[%s809 + $0x3c] sm:$0xf]
    %v842 = vunpack.c.l.b16 %v810
    %v843 = vunpack.c.l.b16 %v811
    %v844 = vunpack.c.l.b16 %v812
    %v845 = vunpack.c.l.b16 %v813
    %v846 = vunpack.c.l.b16 %v814
    %v847 = vunpack.c.l.b16 %v815
    %v848 = vunpack.c.l.b16 %v816
    %v849 = vunpack.c.l.b16 %v817
    %v850 = vunpack.c.l.b16 %v818
    %v851 = vunpack.c.l.b16 %v819
    %v852 = vunpack.c.l.b16 %v820
    %v853 = vunpack.c.l.b16 %v821
    %v854 = vunpack.c.l.b16 %v822
    %v855 = vunpack.c.l.b16 %v823
    %v856 = vunpack.c.l.b16 %v824
    %v857 = vunpack.c.l.b16 %v825
    %v858 = vpack.c.b16 %v843, %v842
    %v859 = vpack.c.b16 %v845, %v844
    %v860 = vpack.c.b16 %v847, %v846
    %v861 = vpack.c.b16 %v849, %v848
    %v862 = vpack.c.b16 %v851, %v850
    %v863 = vpack.c.b16 %v853, %v852
    %v864 = vpack.c.b16 %v855, %v854
    %v865 = vpack.c.b16 %v857, %v856
    %874 = vmatprep.subr.bf16.mxu0 0
    %875 = vmatpush1.bf16.msra.mxu0 %v858
    %876 = vmatprep.subr.bf16.mxu0 0
    %877 = vmatpush1.bf16.msra.mxu0 %v859
    %878 = vmatprep.subr.bf16.mxu0 0
    %879 = vmatpush1.bf16.msra.mxu0 %v860
    %880 = vmatprep.subr.bf16.mxu0 0
    %881 = vmatpush1.bf16.msra.mxu0 %v861
    %882 = vmatprep.subr.bf16.mxu0 0
    %883 = vmatpush1.bf16.msra.mxu0 %v862
    %884 = vmatprep.subr.bf16.mxu0 0
    %885 = vmatpush1.bf16.msra.mxu0 %v863
    %886 = vmatprep.subr.bf16.mxu0 0
    %887 = vmatpush1.bf16.msra.mxu0 %v864
    %888 = vmatprep.subr.bf16.mxu0 0
    %889 = vmatpush1.bf16.msra.mxu0 %v865
    %890 = vmatprep.subr.bf16.mxu0 0
    %891 = vmatpush1.bf16.msra.mxu0 0
    %892 = vmatprep.subr.bf16.mxu0 0
    %893 = vmatpush1.bf16.msra.mxu0 0
    %894 = vmatprep.subr.bf16.mxu0 0
    %895 = vmatpush1.bf16.msra.mxu0 0
    %896 = vmatprep.subr.bf16.mxu0 0
    %897 = vmatpush1.bf16.msra.mxu0 0
    %898 = vmatprep.subr.bf16.mxu0 0
    %899 = vmatpush1.bf16.msra.mxu0 0
    %900 = vmatprep.subr.bf16.mxu0 0
    %901 = vmatpush1.bf16.msra.mxu0 0
    %902 = vmatprep.subr.bf16.mxu0 0
    %903 = vmatpush1.bf16.msra.mxu0 0
    %904 = vmatprep.subr.bf16.mxu0 0
    %905 = vmatpush1.bf16.msra.mxu0 0
    %906 = vmatprep.mubr.bf16.mxu0 0
    %907 = vmatmul.mubr.bf16.gmra.mrb[0].mxu0 %v807
    %v908 = vpop.f32.mrb[0].mxu0
    %v909 = vadd.f32 0.0, %v908
    %v910 = vpop.f32.mrb[0].mxu0
    %v911 = vpop.f32.mrb[0].mxu0
    %v912 = vadd.f32 0.0, %v911
    %v913 = vpop.f32.mrb[0].mxu0
    %914 = vmatprep.mubr.bf16.mxu0 0
    %915 = vmatmul.mubr.bf16.gmra.mrb[0].mxu0 %v808
    %v916 = vpop.f32.mrb[0].mxu0
    %v917 = vadd.f32 0.0, %v916
    %v918 = vpop.f32.mrb[0].mxu0
    %v919 = vpop.f32.mrb[0].mxu0
    %v920 = vadd.f32 0.0, %v919
    %v921 = vpop.f32.mrb[0].mxu0
    %922 = vdwg.mxu0
    %v939 = vunpack.c.l.b16 %v791
    %v940 = vunpack.c.l.b16 %v792
    %v941 = vunpack.c.l.b16 %v793
    %v942 = vunpack.c.l.b16 %v794
    %v943 = vunpack.c.l.b16 %v795
    %v944 = vunpack.c.l.b16 %v796
    %v945 = vunpack.c.l.b16 %v797
    %v946 = vunpack.c.l.b16 %v798
    %v947 = vunpack.c.l.b16 %v799
    %v948 = vunpack.c.l.b16 %v800
    %v949 = vunpack.c.l.b16 %v801
    %v950 = vunpack.c.l.b16 %v802
    %v951 = vunpack.c.l.b16 %v803
    %v952 = vunpack.c.l.b16 %v804
    %v953 = vunpack.c.l.b16 %v805
    %v954 = vunpack.c.l.b16 %v806
    %v955 = vpack.c.b16 %v940, %v939
    %v956 = vpack.c.b16 %v942, %v941
    %v957 = vpack.c.b16 %v944, %v943
    %v958 = vpack.c.b16 %v946, %v945
    %v959 = vpack.c.b16 %v948, %v947
    %v960 = vpack.c.b16 %v950, %v949
    %v961 = vpack.c.b16 %v952, %v951
    %v962 = vpack.c.b16 %v954, %v953
    %971 = vmatprep.subr.bf16.mxu0 0
    %972 = vmatpush1.bf16.msra.mxu0 %v955
    %973 = vmatprep.subr.bf16.mxu0 0
    %974 = vmatpush1.bf16.msra.mxu0 %v956
    %975 = vmatprep.subr.bf16.mxu0 0
    %976 = vmatpush1.bf16.msra.mxu0 %v957
    %977 = vmatprep.subr.bf16.mxu0 0
    %978 = vmatpush1.bf16.msra.mxu0 %v958
    %979 = vmatprep.subr.bf16.mxu0 0
    %980 = vmatpush1.bf16.msra.mxu0 %v959
    %981 = vmatprep.subr.bf16.mxu0 0
    %982 = vmatpush1.bf16.msra.mxu0 %v960
    %983 = vmatprep.subr.bf16.mxu0 0
    %984 = vmatpush1.bf16.msra.mxu0 %v961
    %985 = vmatprep.subr.bf16.mxu0 0
    %986 = vmatpush1.bf16.msra.mxu0 %v962
    %987 = vmatprep.subr.bf16.mxu0 0
    %988 = vmatpush1.bf16.msra.mxu0 0
    %989 = vmatprep.subr.bf16.mxu0 0
    %990 = vmatpush1.bf16.msra.mxu0 0
    %991 = vmatprep.subr.bf16.mxu0 0
    %992 = vmatpush1.bf16.msra.mxu0 0
    %993 = vmatprep.subr.bf16.mxu0 0
    %994 = vmatpush1.bf16.msra.mxu0 0
    %995 = vmatprep.subr.bf16.mxu0 0
    %996 = vmatpush1.bf16.msra.mxu0 0
    %997 = vmatprep.subr.bf16.mxu0 0
    %998 = vmatpush1.bf16.msra.mxu0 0
    %999 = vmatprep.subr.bf16.mxu0 0
    %1000 = vmatpush1.bf16.msra.mxu0 0
    %1001 = vmatprep.subr.bf16.mxu0 0
    %1002 = vmatpush1.bf16.msra.mxu0 0
    %1003 = vmatprep.mubr.bf16.mxu0 0
    %1004 = vmatmul.mubr.bf16.gmra.mrb[0].mxu0 %v789
    %v1005 = vpop.f32.mrb[0].mxu0
    %v1006 = vadd.f32 %v909, %v1005
    %v1007 = vpop.f32.mrb[0].mxu0
    %v1008 = vpop.f32.mrb[0].mxu0
    %v1009 = vadd.f32 %v912, %v1008
    %v1010 = vpop.f32.mrb[0].mxu0
    %1011 = vmatprep.mubr.bf16.mxu0 0
    %1012 = vmatmul.mubr.bf16.gmra.mrb[0].mxu0 %v790
    %v1013 = vpop.f32.mrb[0].mxu0
    %v1014 = vadd.f32 %v917, %v1013
    %v1015 = vpop.f32.mrb[0].mxu0
    %v1016 = vpop.f32.mrb[0].mxu0
    %v1017 = vadd.f32 %v920, %v1016
    %v1018 = vpop.f32.mrb[0].mxu0
    %1019 = vdwg.mxu0
    %v1020 = vrot.slane %v773, 1
    %v1021 = vrot.slane %v774, 1
    %v1022 = vrot.slane %v775, 1
    %v1023 = vrot.slane %v776, 1
    %v1024 = vsel %vm407, %v1022, %v1023
    %v1025 = vsel %vm407, %v1021, %v1022
    %v1026 = vsel %vm407, %v1020, %v1021
    %v1027 = vsel %vm407, %v1023, %v1020
    %v1028 = vsel %vm424, %v1026, 0.0
    %v1029 = vsel %vm425, %v1025, 0.0
    %v1030 = vsel %vm426, %v1024, 0.0
    %v1031 = vsel %vm427, %v1027, 0.0
    %v1032 = vpack.c.bf16 %v1029, %v1028
    %v1033 = vpack.c.bf16 %v1031, %v1030
    %s1034 = scalar_lea.vmem [#allocation7], 128
    %v1035 = vld [vmem:[%s1034] sm:$0xf]
    %v1036 = vld [vmem:[%s1034 + $0x4] sm:$0xf]
    %v1037 = vld [vmem:[%s1034 + $0x8] sm:$0xf]
    %v1038 = vld [vmem:[%s1034 + $0xc] sm:$0xf]
    %v1039 = vld [vmem:[%s1034 + $0x10] sm:$0xf]
    %v1040 = vld [vmem:[%s1034 + $0x14] sm:$0xf]
    %v1041 = vld [vmem:[%s1034 + $0x18] sm:$0xf]
    %v1042 = vld [vmem:[%s1034 + $0x1c] sm:$0xf]
    %v1043 = vld [vmem:[%s1034 + $0x20] sm:$0xf]
    %v1044 = vld [vmem:[%s1034 + $0x24] sm:$0xf]
    %v1045 = vld [vmem:[%s1034 + $0x28] sm:$0xf]
    %v1046 = vld [vmem:[%s1034 + $0x2c] sm:$0xf]
    %v1047 = vld [vmem:[%s1034 + $0x30] sm:$0xf]
    %v1048 = vld [vmem:[%s1034 + $0x34] sm:$0xf]
    %v1049 = vld [vmem:[%s1034 + $0x38] sm:$0xf]
    %v1050 = vld [vmem:[%s1034 + $0x3c] sm:$0xf]
    %v1067 = vunpack.c.l.b16 %v1035
    %v1068 = vunpack.c.l.b16 %v1036
    %v1069 = vunpack.c.l.b16 %v1037
    %v1070 = vunpack.c.l.b16 %v1038
    %v1071 = vunpack.c.l.b16 %v1039
    %v1072 = vunpack.c.l.b16 %v1040
    %v1073 = vunpack.c.l.b16 %v1041
    %v1074 = vunpack.c.l.b16 %v1042
    %v1075 = vunpack.c.l.b16 %v1043
    %v1076 = vunpack.c.l.b16 %v1044
    %v1077 = vunpack.c.l.b16 %v1045
    %v1078 = vunpack.c.l.b16 %v1046
    %v1079 = vunpack.c.l.b16 %v1047
    %v1080 = vunpack.c.l.b16 %v1048
    %v1081 = vunpack.c.l.b16 %v1049
    %v1082 = vunpack.c.l.b16 %v1050
    %v1083 = vpack.c.b16 %v1068, %v1067
    %v1084 = vpack.c.b16 %v1070, %v1069
    %v1085 = vpack.c.b16 %v1072, %v1071
    %v1086 = vpack.c.b16 %v1074, %v1073
    %v1087 = vpack.c.b16 %v1076, %v1075
    %v1088 = vpack.c.b16 %v1078, %v1077
    %v1089 = vpack.c.b16 %v1080, %v1079
    %v1090 = vpack.c.b16 %v1082, %v1081
    %1099 = vmatprep.subr.bf16.mxu0 0
    %1100 = vmatpush1.bf16.msra.mxu0 %v1083
    %1101 = vmatprep.subr.bf16.mxu0 0
    %1102 = vmatpush1.bf16.msra.mxu0 %v1084
    %1103 = vmatprep.subr.bf16.mxu0 0
    %1104 = vmatpush1.bf16.msra.mxu0 %v1085
    %1105 = vmatprep.subr.bf16.mxu0 0
    %1106 = vmatpush1.bf16.msra.mxu0 %v1086
    %1107 = vmatprep.subr.bf16.mxu0 0
    %1108 = vmatpush1.bf16.msra.mxu0 %v1087
    %1109 = vmatprep.subr.bf16.mxu0 0
    %1110 = vmatpush1.bf16.msra.mxu0 %v1088
    %1111 = vmatprep.subr.bf16.mxu0 0
    %1112 = vmatpush1.bf16.msra.mxu0 %v1089
    %1113 = vmatprep.subr.bf16.mxu0 0
    %1114 = vmatpush1.bf16.msra.mxu0 %v1090
    %1115 = vmatprep.subr.bf16.mxu0 0
    %1116 = vmatpush1.bf16.msra.mxu0 0
    %1117 = vmatprep.subr.bf16.mxu0 0
    %1118 = vmatpush1.bf16.msra.mxu0 0
    %1119 = vmatprep.subr.bf16.mxu0 0
    %1120 = vmatpush1.bf16.msra.mxu0 0
    %1121 = vmatprep.subr.bf16.mxu0 0
    %1122 = vmatpush1.bf16.msra.mxu0 0
    %1123 = vmatprep.subr.bf16.mxu0 0
    %1124 = vmatpush1.bf16.msra.mxu0 0
    %1125 = vmatprep.subr.bf16.mxu0 0
    %1126 = vmatpush1.bf16.msra.mxu0 0
    %1127 = vmatprep.subr.bf16.mxu0 0
    %1128 = vmatpush1.bf16.msra.mxu0 0
    %1129 = vmatprep.subr.bf16.mxu0 0
    %1130 = vmatpush1.bf16.msra.mxu0 0
    %1131 = vmatprep.mubr.bf16.mxu0 0
    %1132 = vmatmul.mubr.bf16.gmra.mrb[0].mxu0 %v1032
    %v1133 = vpop.f32.mrb[0].mxu0
    %v1134 = vadd.f32 0.0, %v1133
    %v1135 = vpop.f32.mrb[0].mxu0
    %v1136 = vpop.f32.mrb[0].mxu0
    %v1137 = vadd.f32 0.0, %v1136
    %v1138 = vpop.f32.mrb[0].mxu0
    %1139 = vmatprep.mubr.bf16.mxu0 0
    %1140 = vmatmul.mubr.bf16.gmra.mrb[0].mxu0 %v1033
    %v1141 = vpop.f32.mrb[0].mxu0
    %v1142 = vadd.f32 0.0, %v1141
    %v1143 = vpop.f32.mrb[0].mxu0
    %v1144 = vpop.f32.mrb[0].mxu0
    %v1145 = vadd.f32 0.0, %v1144
    %v1146 = vpop.f32.mrb[0].mxu0
    %1147 = vdwg.mxu0
    %v1148 = vadd.f32 %v1006, %v1134
    %v1149 = vadd.f32 %v1009, %v1137
    %v1150 = vadd.f32 %v1014, %v1142
    %v1151 = vadd.f32 %v1017, %v1145
    %v1152 = vmul.f32 %v1148, %v1148
    %v1153 = vmul.f32 %v1149, %v1149
    %v1154 = vmul.f32 %v1150, %v1150
    %v1155 = vmul.f32 %v1151, %v1151
    %1156 = vmatprep.subr.mxu0 %v1152
    %1157 = vmatpush1.msra.mxu0 %v1148
    %1158 = vmatprep.subr.mxu0 %v1153
    %1159 = vmatpush1.msra.mxu0 %v1149
    %1160 = vmatprep.subr.mxu0 %v1154
    %1161 = vmatpush1.msra.mxu0 %v1150
    %1162 = vmatprep.subr.mxu0 %v1155
    %1163 = vmatpush1.msra.mxu0 %v1151
    %1164 = vmatprep.subr.mxu0 0.0
    %1165 = vmatpush1.msra.mxu0 0.0
    %1166 = vmatprep.subr.mxu0 0.0
    %1167 = vmatpush1.msra.mxu0 0.0
    %1168 = vmatprep.subr.mxu0 0.0
    %1169 = vmatpush1.msra.mxu0 0.0
    %1170 = vmatprep.subr.mxu0 0.0
    %1171 = vmatpush1.msra.mxu0 0.0
    %1172 = vmatprep.subr.mxu0 0.0
    %1173 = vmatpush1.msra.mxu0 0.0
    %1174 = vmatprep.subr.mxu0 0.0
    %1175 = vmatpush1.msra.mxu0 0.0
    %1176 = vmatprep.subr.mxu0 0.0
    %1177 = vmatpush1.msra.mxu0 0.0
    %1178 = vmatprep.subr.mxu0 0.0
    %1179 = vmatpush1.msra.mxu0 0.0
    %1180 = vmatprep.subr.mxu0 0.0
    %1181 = vmatpush1.msra.mxu0 0.0
    %1182 = vmatprep.subr.mxu0 0.0
    %1183 = vmatpush1.msra.mxu0 0.0
    %1184 = vmatprep.subr.mxu0 0.0
    %1185 = vmatpush1.msra.mxu0 0.0
    %1186 = vmatprep.subr.mxu0 0.0
    %1187 = vmatpush1.msra.mxu0 0.0
    %1188 = vmatprep.subr.mxu0 0.0
    %1189 = vmatpush1.msra.mxu0 0.0
    %1190 = vmatprep.subr.mxu0 0.0
    %1191 = vmatpush1.msra.mxu0 0.0
    %1192 = vmatprep.subr.mxu0 0.0
    %1193 = vmatpush1.msra.mxu0 0.0
    %1194 = vmatprep.subr.mxu0 0.0
    %1195 = vmatpush1.msra.mxu0 0.0
    %1196 = vmatprep.subr.mxu0 0.0
    %1197 = vmatpush1.msra.mxu0 0.0
    %1198 = vmatprep.subr.mxu0 0.0
    %1199 = vmatpush1.msra.mxu0 0.0
    %1200 = vmatprep.subr.mxu0 0.0
    %1201 = vmatpush1.msra.mxu0 0.0
    %1202 = vmatprep.subr.mxu0 0.0
    %1203 = vmatpush1.msra.mxu0 0.0
    %1204 = vmatprep.subr.mxu0 0.0
    %1205 = vmatpush1.msra.mxu0 0.0
    %1206 = vmatprep.subr.mxu0 0.0
    %1207 = vmatpush1.msra.mxu0 0.0
    %1208 = vmatprep.subr.mxu0 0.0
    %1209 = vmatpush1.msra.mxu0 0.0
    %1210 = vmatprep.subr.mxu0 0.0
    %1211 = vmatpush1.msra.mxu0 0.0
    %1212 = vmatprep.subr.mxu0 0.0
    %1213 = vmatpush1.msra.mxu0 0.0
    %1214 = vmatprep.subr.mxu0 0.0
    %1215 = vmatpush1.msra.mxu0 0.0
    %1216 = vmatprep.subr.mxu0 0.0
    %1217 = vmatpush1.msra.mxu0 0.0
    %1218 = vmatprep.subr.mxu0 0.0
    %1219 = vmatpush1.msra.mxu0 0.0
    %1220 = vmatprep.mubr.f32.mxu0 0.0
    %1221 = vmatmul.mubr.f32.gmra.mrb[0].mxu0 %v558
    %v1222 = vpop.f32.mrb[0].mxu0
    %v1223 = vadd.f32 0.0, %v1222
    %v1224 = vpop.f32.mrb[0].mxu0
    %v1225 = vadd.f32 0.0, %v1224
    %1226 = vdwg.mxu0
    %v1228 = vrot.slane %v1225, 7
    %v1230 = vsel %vm634, %v1223, %v1228
    %1231 = vmatprep.subr.mxu0 0.0
    %1232 = vmatpush1.msra.mxu0 %v636
    %1233 = vmatprep.subr.mxu0 0.0
    %1234 = vmatpush1.msra.mxu0 %v637
    %1235 = vmatprep.subr.mxu0 0.0
    %1236 = vmatpush1.msra.mxu0 %v638
    %1237 = vmatprep.subr.mxu0 0.0
    %1238 = vmatpush1.msra.mxu0 %v639
    %1239 = vmatprep.subr.mxu0 0.0
    %1240 = vmatpush1.msra.mxu0 %v640
    %1241 = vmatprep.subr.mxu0 0.0
    %1242 = vmatpush1.msra.mxu0 %v641
    %1243 = vmatprep.subr.mxu0 0.0
    %1244 = vmatpush1.msra.mxu0 %v642
    %1245 = vmatprep.subr.mxu0 0.0
    %1246 = vmatpush1.msra.mxu0 %v643
    %1247 = vmatprep.subr.mxu0 0.0
    %1248 = vmatpush1.msra.mxu0 %v644
    %1249 = vmatprep.subr.mxu0 0.0
    %1250 = vmatpush1.msra.mxu0 %v645
    %1251 = vmatprep.subr.mxu0 0.0
    %1252 = vmatpush1.msra.mxu0 %v646
    %1253 = vmatprep.subr.mxu0 0.0
    %1254 = vmatpush1.msra.mxu0 %v647
    %1255 = vmatprep.subr.mxu0 0.0
    %1256 = vmatpush1.msra.mxu0 %v648
    %1257 = vmatprep.subr.mxu0 0.0
    %1258 = vmatpush1.msra.mxu0 %v649
    %1259 = vmatprep.subr.mxu0 0.0
    %1260 = vmatpush1.msra.mxu0 %v650
    %1261 = vmatprep.subr.mxu0 0.0
    %1262 = vmatpush1.msra.mxu0 %v651
    %1263 = vmatprep.subr.mxu0 0.0
    %1264 = vmatpush1.msra.mxu0 0.0
    %1265 = vmatprep.subr.mxu0 0.0
    %1266 = vmatpush1.msra.mxu0 0.0
    %1267 = vmatprep.subr.mxu0 0.0
    %1268 = vmatpush1.msra.mxu0 0.0
    %1269 = vmatprep.subr.mxu0 0.0
    %1270 = vmatpush1.msra.mxu0 0.0
    %1271 = vmatprep.subr.mxu0 0.0
    %1272 = vmatpush1.msra.mxu0 0.0
    %1273 = vmatprep.subr.mxu0 0.0
    %1274 = vmatpush1.msra.mxu0 0.0
    %1275 = vmatprep.subr.mxu0 0.0
    %1276 = vmatpush1.msra.mxu0 0.0
    %1277 = vmatprep.subr.mxu0 0.0
    %1278 = vmatpush1.msra.mxu0 0.0
    %1279 = vmatprep.subr.mxu0 0.0
    %1280 = vmatpush1.msra.mxu0 0.0
    %1281 = vmatprep.subr.mxu0 0.0
    %1282 = vmatpush1.msra.mxu0 0.0
    %1283 = vmatprep.subr.mxu0 0.0
    %1284 = vmatpush1.msra.mxu0 0.0
    %1285 = vmatprep.subr.mxu0 0.0
    %1286 = vmatpush1.msra.mxu0 0.0
    %1287 = vmatprep.subr.mxu0 0.0
    %1288 = vmatpush1.msra.mxu0 0.0
    %1289 = vmatprep.subr.mxu0 0.0
    %1290 = vmatpush1.msra.mxu0 0.0
    %1291 = vmatprep.subr.mxu0 0.0
    %1292 = vmatpush1.msra.mxu0 0.0
    %1293 = vmatprep.subr.mxu0 0.0
    %1294 = vmatpush1.msra.mxu0 0.0
    %1295 = vmatprep.mubr.f32.mxu0 0.0
    %1296 = vmatmul.mubr.f32.gmra.mrb[0].mxu0 %v1230
    %v1297 = vpop.f32.mrb[0].mxu0
    %v1298 = vadd.f32 0.0, %v1297
    %v1299 = vpop.f32.mrb[0].mxu0
    %1300 = vdwg.mxu0
    %v1301 = vmul.f32 %v1298, 0.001953125
    %v1302 = vmul.f32 %v1301, %v1301
    %v1304 = vrot.slane %v1302, 7
    %v1306 = vsub.f32 %v1301, %v1304
    %v1307 = vmax.f32 %v1306, 0.0
    %v1308 = vld [vmem:[%s5] sm:$0x1]
    %v1309 = vadd.f32 %v1307, 1e-05
    %v1310 = vrsqrt.pop %v1309
    %v1313 = vunpack.c.l.s4 1966171168
    %v1314 = vunpack.c.0.s8 %v1313
    %v1315 = vlaneseq
    %v1316 = vshrl.u32 %v1315, 7
    %v1317 = vsub.s32 %v1314, %v1316
    %v1318 = vrot.slane %v1310, %v1317
    %v1319 = vcombine.high %v1318, %v1318
    %v1321 = vunpack.c.l.s4 1966171168
    %v1322 = vunpack.c.0.s8 %v1321
    %v1323 = vlaneseq
    %v1324 = vshrl.u32 %v1323, 7
    %v1325 = vsub.s32 %v1322, %v1324
    %v1326 = vrot.slane %v1319, %v1325
    %v1328 = vmul.f32 %v1308, %v1326
    %v1329 = vld [vmem:[%s6] sm:$0x1]
    %v1330 = vmul.f32 %v1301, %v1328
    %v1331 = vsub.f32 %v1329, %v1330
    %v1333 = vlaneseq
    %v1334 = vshrl.u32 %v1333, 7
    %v1335 = vsub.s32 0, %v1334
    %v1336 = vrot.slane %v1328, %v1335
    %v1338 = vmul.f32 %v1148, %v1336
    %v1339 = vmul.f32 %v1149, %v1336
    %v1340 = vmul.f32 %v1150, %v1336
    %v1341 = vmul.f32 %v1151, %v1336
    %v1343 = vlaneseq
    %v1344 = vshrl.u32 %v1343, 7
    %v1345 = vsub.s32 0, %v1344
    %v1346 = vrot.slane %v1331, %v1345
    %v1348 = vadd.f32 %v1338, %v1346
    %v1349 = vadd.f32 %v1339, %v1346
    %v1350 = vadd.f32 %v1340, %v1346
    %v1351 = vadd.f32 %v1341, %v1346
    %v1352 = vmax.f32 %v1348, 0.0
    %v1353 = vmax.f32 %v1349, 0.0
    %v1354 = vmax.f32 %v1350, 0.0
    %v1355 = vmax.f32 %v1351, 0.0
    %1356 = vst [vmem:[#allocation10] sm:$0xff] %v1352
    %1357 = vst [vmem:[#allocation10 + $0x8] sm:$0xff] %v1353
    %1358 = vst [vmem:[#allocation10 + $0x10] sm:$0xff] %v1354
    %1359 = vst [vmem:[#allocation10 + $0x18] sm:$0xff] %v1355
    // Predicated region
    $region50: #{tpu_custom_call.1} parent=1 // pred_check
      _
    $region51: #{tpu_custom_call.1} parent=1 // pred_check_branch
      %1361 = sbr.rel (0) target = $region53
    $region52: #{tpu_custom_call.1} parent=1 // pred_region
      %s1363 = ssub.s32 512, 512
      %1364 = vsyncadd [#allocation4], %s1363
      %s1365 = sshll.u32 [#allocation10], 4
      %s1366 = int_to_ptr.vmem [resolvable:$true] %s1365
      %1371 = dma.vmem_to_hbm [thread:$0]  %s1366, 512, %s8, [#allocation4], 128, 128, 8
    $region53: #{tpu_custom_call.1} parent=1 // pred_fallthru
      _
    // Predicated region
    $region54: #{tpu_custom_call.1} parent=1 // pred_check
      _
    $region55: #{tpu_custom_call.1} parent=1 // pred_check_branch
      %1373 = sbr.rel (0) target = $region57
    $region56: #{tpu_custom_call.1} parent=1 // pred_region
      %1374 = dma.done [#allocation4], 512
    $region57: #{tpu_custom_call.1} parent=1 // pred_fallthru
      _
    %1375 = vsyncpa [#allocation3], 1
    %1376 = vsyncpa [#allocation6], 1
    %1377 = vsyncpa [#allocation9], 1
    %1378 = vsyncpa [#allocation4], 1

</llo_original>
